<compile_context>
chip_gen: v7x
topology: tpu7x:2x2x1
jax: 0.10.0
libtpu: 0.0.40
codegen_flags: <defaults>
</compile_context>

<pallas_src>
import numpy as np
import jax
import jax.numpy as jnp
from jax.experimental import pallas as pl
from jax.experimental.pallas import tpu as pltpu

N_NODES = 16
DIM_HIDDEN = 32
DIM_MLP = 32
DIM_PRED = 1
DIM_NODE_FEATURE = 3
NUM_ROUNDS = 2


# ----------------------------------------------------------------------------
# Fused kernel: all rounds x levels of the GRU message passing, then the MLP
# head, in a single pallas_call.  All operands live in VMEM for the whole call.
#
#   dyn_ref  ((2+n_lev)*N, 4H): rows 0:N cols 0:N = adj_t (dst, src)
#                               rows N:2N cols 0:H = h0
#                               rows (2+l)N:(3+l)N cols 0:H = level mask l
#   w_ref    (3H+2N, 4H):       rows 0:2H          = GRU block weight
#                               rows 2H:3H         = [wagg | w1 | w2 | w3_pad]
#                               rows 3H:3H+N       = GRU fused bias (bcast N)
#                               rows 3H+N:3H+2N    = [bagg | b1 | b2 | b3_pad]
#   out_ref  (N, 4H):           cols 0:H = h_final, col H = pred
# ----------------------------------------------------------------------------
def _deepsat_fused_kernel(dyn_ref, w_ref, out_ref):
    N, H = N_NODES, DIM_HIDDEN
    n_lev = dyn_ref.shape[0] // N - 2            # static

    h = dyn_ref[N:2 * N, 0:H]                    # (N, H) initial node_state

    # Static unroll over (round, level): 6 steps at the chosen config.
    for step in range(NUM_ROUNDS * n_lev):
        lvl = step % n_lev

        # conv_sum aggregation: msg[dst] = sum_{src->dst} (h[src] @ Wagg + bagg).
        # (AggConv applies the Linear per source edge, so bagg is inside the
        #  sum; destinations outside the level are discarded by the blend.)
        adj_t = dyn_ref[0:N, 0:N]                                  # (N, N)
        wagg = w_ref[2 * H:3 * H, 0:H]                             # (H, H)
        bagg = w_ref[3 * H + N:3 * H + 2 * N, 0:H]                 # (N, H)
        m_src = jnp.dot(h, wagg, preferred_element_type=jnp.float32) + bagg
        msg = jnp.dot(adj_t, m_src, preferred_element_type=jnp.float32)   # (N, H)

        # Fused GRU gates: one (N,2H)x(2H,4H) MXU op -> (N,4H) full-lane result.
        xh = jnp.concatenate([msg, h], axis=1)                     # (N, 2H)
        g = (jnp.dot(xh, w_ref[0:2 * H, :], preferred_element_type=jnp.float32)
             + w_ref[3 * H:3 * H + N, :])                          # (N, 4H)

        r = jax.nn.sigmoid(g[:, 0:H])                # W_ir msg + b_ir + W_hr h + b_hr
        z = jax.nn.sigmoid(g[:, H:2 * H])            # W_iz msg + b_iz + W_hz h + b_hz
        n = jnp.tanh(g[:, 2 * H:3 * H] + r * g[:, 3 * H:4 * H])   # n-gate (torch order)
        h_cand = (1.0 - z) * n + z * h

        # node_state[:, l_node, :] = l_state  (exact select-free blend, lm in {0,1})
        lm = dyn_ref[(2 + lvl) * N:(3 + lvl) * N, 0:H]             # (N, H)
        h = h * (1.0 - lm) + lm * h_cand

    # Predictor MLP head (num_fc=3: Linear-ReLU-Linear-ReLU-Linear).
    b_head = w_ref[3 * H + N:3 * H + 2 * N, :]                     # (N, 4H)
    y = jnp.maximum(
        jnp.dot(h, w_ref[2 * H:3 * H, H:2 * H],
                preferred_element_type=jnp.float32) + b_head[:, H:2 * H], 0.0)
    y = jnp.maximum(
        jnp.dot(y, w_ref[2 * H:3 * H, 2 * H:3 * H],
                preferred_element_type=jnp.float32) + b_head[:, 2 * H:3 * H], 0.0)
    p = (jnp.dot(y, w_ref[2 * H:3 * H, 3 * H:4 * H],
                 preferred_element_type=jnp.float32) + b_head[:, 3 * H:4 * H])  # col 0 = pred

    # Single lane-dense (N, 4H) store: h | p | zeros.
    out_ref[...] = jnp.concatenate(
        [h, p, jnp.zeros((N, 2 * H), jnp.float32)], axis=1)


# ----------------------------------------------------------------------------
# Wrapper: packs graph metadata + weights into two slabs once, launches the
# single fused kernel, and unpacks the lane-dense output slab.
# ----------------------------------------------------------------------------
def deepsat_forward(adj, forward_level, params):
    N, H, M, P = N_NODES, DIM_HIDDEN, DIM_MLP, DIM_PRED
    assert M == H, "packing assumes dim_mlp == dim_hidden"
    LANES = 4 * H

    fl = np.asarray(forward_level)
    num_layers_f = int(fl.max()) + 1
    n_lev = num_layers_f - 1
    assert N <= LANES

    # --- dyn slab: adjacency (transposed), h0, per-level masks -------------
    h0 = jnp.broadcast_to(
        (params["w_emd"][:, 0] + params["b_emd"])[None, :], (N, H)).astype(jnp.float32)
    adj_t = jnp.asarray(adj, jnp.float32).T        # adj_t[dst, src]

    lmasks_np = np.zeros((n_lev, N, H), dtype=np.float32)
    for l in range(1, num_layers_f):
        lmasks_np[l - 1, fl == l, :] = 1.0
    lmasks = jnp.asarray(lmasks_np)

    def pad_lanes(a):
        return jnp.pad(a, ((0, 0), (0, LANES - a.shape[1])))

    dyn_slab = jnp.concatenate(
        [pad_lanes(adj_t), pad_lanes(h0)]
        + [pad_lanes(lmasks[l]) for l in range(n_lev)], axis=0)    # ((2+n_lev)N, 4H)

    # --- weight slab --------------------------------------------------------
    w_ih, b_ih = params["w_ih"], params["b_ih"]
    w_hh, b_hh = params["w_hh"], params["b_hh"]
    wir, wiz, win = w_ih[:, 0:H], w_ih[:, H:2 * H], w_ih[:, 2 * H:3 * H]
    whr, whz, whn = w_hh[:, 0:H], w_hh[:, H:2 * H], w_hh[:, 2 * H:3 * H]
    bir, biz, bin_ = b_ih[:, 0:H], b_ih[:, H:2 * H], b_ih[:, 2 * H:3 * H]
    bhr, bhz, bhn = b_hh[:, 0:H], b_hh[:, H:2 * H], b_hh[:, 2 * H:3 * H]

    zHH = jnp.zeros((H, H), jnp.float32)
    w_blk = jnp.concatenate([
        jnp.concatenate([wir, wiz, win, zHH], axis=1),   # rows multiply msg
        jnp.concatenate([whr, whz, zHH, whn], axis=1),   # rows multiply h
    ], axis=0)                                           # (2H, 4H)

    w3_pad = jnp.pad(params["w3"], ((0, 0), (0, H - P)))             # (M, H)
    w_sq = jnp.concatenate(
        [params["w_agg"], params["w1"], params["w2"], w3_pad], axis=1)  # (H, 4H)

    b_blk = jnp.concatenate([bir + bhr, biz + bhz, bin_, bhn], axis=1)  # (1, 4H)
    b3_pad = jnp.pad(params["b3"], ((0, 0), (0, H - P)))
    b_head = jnp.concatenate(
        [params["b_agg"], params["b1"], params["b2"], b3_pad], axis=1)  # (1, 4H)

    w_slab = jnp.concatenate([
        w_blk, w_sq,
        jnp.broadcast_to(b_blk, (N, LANES)),
        jnp.broadcast_to(b_head, (N, LANES)),
    ], axis=0).astype(jnp.float32)                       # (3H+2N, 4H)

    # --- launch -------------------------------------------------------------
    steps = NUM_ROUNDS * n_lev
    flops_per_step = 2 * N * H * H + 2 * N * N * H + 2 * N * (2 * H) * (4 * H)
    mlp_flops = 2 * N * (H * M + M * M + M * H)
    total_flops = steps * flops_per_step + mlp_flops
    transcendentals = steps * 3 * N * H
    bytes_accessed = 4 * (int(np.prod(dyn_slab.shape))
                          + int(np.prod(w_slab.shape)) + N * LANES)

    vmem = pl.BlockSpec(memory_space=pltpu.MemorySpace.VMEM)
    out = pl.pallas_call(
        _deepsat_fused_kernel,
        out_shape=jax.ShapeDtypeStruct((N, LANES), jnp.float32),
        in_specs=[vmem, vmem],
        out_specs=vmem,
        cost_estimate=pl.CostEstimate(flops=total_flops,
                                      transcendentals=transcendentals,
                                      bytes_accessed=bytes_accessed),
    )(dyn_slab, w_slab)

    node_embedding = out[:, 0:H]
    pred = out[:, H:H + P]
    return node_embedding, pred


def make_params(key):
    ks = jax.random.split(key, 16)
    s = 0.1
    H, M, P = DIM_HIDDEN, DIM_MLP, DIM_PRED
    return {
        # emd_int: nn.Linear(1, H)   (weight (H,1), bias (H,))
        "w_emd": s * jax.random.normal(ks[0], (H, 1), jnp.float32),
        "b_emd": s * jax.random.normal(ks[1], (H,), jnp.float32),
        # aggr (conv_sum): nn.Linear(H, H), stored transposed as (in, out)
        "w_agg": s * jax.random.normal(ks[2], (H, H), jnp.float32),
        "b_agg": s * jax.random.normal(ks[3], (1, H), jnp.float32),
        # GRU: W_ih (3H, H) / W_hh (3H, H) in torch; stored transposed (H, 3H)
        "w_ih": s * jax.random.normal(ks[4], (H, 3 * H), jnp.float32),
        "b_ih": s * jax.random.normal(ks[5], (1, 3 * H), jnp.float32),
        "w_hh": s * jax.random.normal(ks[6], (H, 3 * H), jnp.float32),
        "b_hh": s * jax.random.normal(ks[7], (1, 3 * H), jnp.float32),
        # predictor MLP (H -> M -> M -> P), transposed (in, out)
        "w1": s * jax.random.normal(ks[8], (H, M), jnp.float32),
        "b1": s * jax.random.normal(ks[9], (1, M), jnp.float32),
        "w2": s * jax.random.normal(ks[10], (M, M), jnp.float32),
        "b2": s * jax.random.normal(ks[11], (1, M), jnp.float32),
        "w3": s * jax.random.normal(ks[12], (M, P), jnp.float32),
        "b3": s * jax.random.normal(ks[13], (1, P), jnp.float32),
    }


if __name__ == "__main__":
    key = jax.random.PRNGKey(0)
    k_param, k_x = jax.random.split(key)

    # Synthetic levelized DAG (circuit-like), 16 nodes, 4 forward levels.
    forward_level = np.array([0, 0, 0, 0, 0, 0,   # PIs
                              1, 1, 1, 1,
                              2, 2, 2, 2,
                              3, 3], dtype=np.int32)
    edges = [(0, 6), (1, 6), (1, 7), (2, 7), (2, 8), (3, 8), (4, 9), (5, 9),
             (6, 10), (7, 10), (7, 11), (8, 11), (8, 12), (9, 12), (6, 13), (9, 13),
             (10, 14), (11, 14), (12, 15), (13, 15)]
    adj_np = np.zeros((N_NODES, N_NODES), dtype=np.float32)
    for src, dst in edges:
        adj_np[src, dst] = 1.0
    adj = jnp.asarray(adj_np)

    # Node features (gate-type one-hots) — present in G but unused since
    # wx_update=False and wx_mlp=False.
    x = jax.random.normal(k_x, (N_NODES, DIM_NODE_FEATURE), jnp.float32)

    params = make_params(k_param)

    node_embedding, pred = deepsat_forward(adj, forward_level, params)
    jax.block_until_ready((node_embedding, pred))

    assert node_embedding.shape == (N_NODES, DIM_HIDDEN)
    assert pred.shape == (N_NODES, DIM_PRED)
    assert bool(jnp.all(jnp.isfinite(node_embedding)))
    assert bool(jnp.all(jnp.isfinite(pred)))
    print("KERNEL_OK")
</pallas_src>

<mosaic_0001>
module attributes {stable_mosaic.version = 11 : i64} {
  func.func @_deepsat_fused_kernel(%arg0: memref<80x128xf32, #tpu.memory_space<vmem>>, %arg1: memref<128x128xf32, #tpu.memory_space<vmem>>, %arg2: memref<16x128xf32, #tpu.memory_space<vmem>>) attributes {dimension_semantics = [], scalar_prefetch = 0 : i64, scratch_operands = 0 : i64, tpu.core_type = #tpu.core_type<tc>} {
    %c16 = arith.constant 16 : index
    %c0 = arith.constant 0 : index
    %0 = vector.load %arg0[%c16, %c0] : memref<80x128xf32, #tpu.memory_space<vmem>>, vector<16x32xf32>
    %c0_0 = arith.constant 0 : index
    %c0_1 = arith.constant 0 : index
    %1 = vector.load %arg0[%c0_0, %c0_1] : memref<80x128xf32, #tpu.memory_space<vmem>>, vector<16x16xf32>
    %c64 = arith.constant 64 : index
    %c0_2 = arith.constant 0 : index
    %2 = vector.load %arg1[%c64, %c0_2] : memref<128x128xf32, #tpu.memory_space<vmem>>, vector<32x32xf32>
    %c112 = arith.constant 112 : index
    %c0_3 = arith.constant 0 : index
    %3 = vector.load %arg1[%c112, %c0_3] : memref<128x128xf32, #tpu.memory_space<vmem>>, vector<16x32xf32>
    %cst = arith.constant dense<0.000000e+00> : vector<16x32xf32>
    %4 = tpu.matmul %0, %2, %cst {dimension_numbers = #tpu.dot_dimension_numbers<[1], [0], [0], [1], [0, 0, 1, 1], [], []>} : vector<16x32xf32>, vector<32x32xf32>, vector<16x32xf32> -> vector<16x32xf32>
    %5 = arith.addf %4, %3 : vector<16x32xf32>
    %cst_4 = arith.constant dense<0.000000e+00> : vector<16x32xf32>
    %6 = tpu.matmul %1, %5, %cst_4 {dimension_numbers = #tpu.dot_dimension_numbers<[1], [0], [0], [1], [0, 0, 1, 1], [], []>} : vector<16x16xf32>, vector<16x32xf32>, vector<16x32xf32> -> vector<16x32xf32>
    %7 = tpu.concatenate %6, %0 in 1 : vector<16x32xf32>, vector<16x32xf32> -> vector<16x64xf32>
    %c0_5 = arith.constant 0 : index
    %c0_6 = arith.constant 0 : index
    %8 = vector.load %arg1[%c0_5, %c0_6] : memref<128x128xf32, #tpu.memory_space<vmem>>, vector<64x128xf32>
    %cst_7 = arith.constant dense<0.000000e+00> : vector<16x128xf32>
    %9 = tpu.matmul %7, %8, %cst_7 {dimension_numbers = #tpu.dot_dimension_numbers<[1], [0], [0], [1], [0, 0, 1, 1], [], []>} : vector<16x64xf32>, vector<64x128xf32>, vector<16x128xf32> -> vector<16x128xf32>
    %c96 = arith.constant 96 : index
    %c0_8 = arith.constant 0 : index
    %10 = vector.load %arg1[%c96, %c0_8] : memref<128x128xf32, #tpu.memory_space<vmem>>, vector<16x128xf32>
    %11 = arith.addf %9, %10 : vector<16x128xf32>
    %12 = vector.extract_strided_slice %11 {offsets = [0, 0], sizes = [16, 32], strides = [1, 1]} : vector<16x128xf32> to vector<16x32xf32>
    %13 = arith.negf %12 : vector<16x32xf32>
    %14 = math.exp %13 : vector<16x32xf32>
    %cst_9 = arith.constant 1.000000e+00 : f32
    %15 = vector.broadcast %cst_9 : f32 to vector<16x32xf32>
    %16 = arith.addf %15, %14 : vector<16x32xf32>
    %17 = arith.divf %15, %16 : vector<16x32xf32>
    %18 = vector.extract_strided_slice %11 {offsets = [0, 32], sizes = [16, 32], strides = [1, 1]} : vector<16x128xf32> to vector<16x32xf32>
    %19 = arith.negf %18 : vector<16x32xf32>
    %20 = math.exp %19 : vector<16x32xf32>
    %cst_10 = arith.constant 1.000000e+00 : f32
    %21 = vector.broadcast %cst_10 : f32 to vector<16x32xf32>
    %22 = arith.addf %21, %20 : vector<16x32xf32>
    %23 = arith.divf %21, %22 : vector<16x32xf32>
    %24 = vector.extract_strided_slice %11 {offsets = [0, 64], sizes = [16, 32], strides = [1, 1]} : vector<16x128xf32> to vector<16x32xf32>
    %25 = vector.extract_strided_slice %11 {offsets = [0, 96], sizes = [16, 32], strides = [1, 1]} : vector<16x128xf32> to vector<16x32xf32>
    %26 = arith.mulf %17, %25 : vector<16x32xf32>
    %27 = arith.addf %24, %26 : vector<16x32xf32>
    %28 = math.tanh %27 : vector<16x32xf32>
    %cst_11 = arith.constant 1.000000e+00 : f32
    %29 = vector.broadcast %cst_11 : f32 to vector<16x32xf32>
    %30 = arith.subf %29, %23 : vector<16x32xf32>
    %31 = arith.mulf %30, %28 : vector<16x32xf32>
    %32 = arith.mulf %23, %0 : vector<16x32xf32>
    %33 = arith.addf %31, %32 : vector<16x32xf32>
    %c32 = arith.constant 32 : index
    %c0_12 = arith.constant 0 : index
    %34 = vector.load %arg0[%c32, %c0_12] : memref<80x128xf32, #tpu.memory_space<vmem>>, vector<16x32xf32>
    %cst_13 = arith.constant 1.000000e+00 : f32
    %35 = vector.broadcast %cst_13 : f32 to vector<16x32xf32>
    %36 = arith.subf %35, %34 : vector<16x32xf32>
    %37 = arith.mulf %0, %36 : vector<16x32xf32>
    %38 = arith.mulf %34, %33 : vector<16x32xf32>
    %39 = arith.addf %37, %38 : vector<16x32xf32>
    %c0_14 = arith.constant 0 : index
    %c0_15 = arith.constant 0 : index
    %40 = vector.load %arg0[%c0_14, %c0_15] : memref<80x128xf32, #tpu.memory_space<vmem>>, vector<16x16xf32>
    %c64_16 = arith.constant 64 : index
    %c0_17 = arith.constant 0 : index
    %41 = vector.load %arg1[%c64_16, %c0_17] : memref<128x128xf32, #tpu.memory_space<vmem>>, vector<32x32xf32>
    %c112_18 = arith.constant 112 : index
    %c0_19 = arith.constant 0 : index
    %42 = vector.load %arg1[%c112_18, %c0_19] : memref<128x128xf32, #tpu.memory_space<vmem>>, vector<16x32xf32>
    %cst_20 = arith.constant dense<0.000000e+00> : vector<16x32xf32>
    %43 = tpu.matmul %39, %41, %cst_20 {dimension_numbers = #tpu.dot_dimension_numbers<[1], [0], [0], [1], [0, 0, 1, 1], [], []>} : vector<16x32xf32>, vector<32x32xf32>, vector<16x32xf32> -> vector<16x32xf32>
    %44 = arith.addf %43, %42 : vector<16x32xf32>
    %cst_21 = arith.constant dense<0.000000e+00> : vector<16x32xf32>
    %45 = tpu.matmul %40, %44, %cst_21 {dimension_numbers = #tpu.dot_dimension_numbers<[1], [0], [0], [1], [0, 0, 1, 1], [], []>} : vector<16x16xf32>, vector<16x32xf32>, vector<16x32xf32> -> vector<16x32xf32>
    %46 = tpu.concatenate %45, %39 in 1 : vector<16x32xf32>, vector<16x32xf32> -> vector<16x64xf32>
    %c0_22 = arith.constant 0 : index
    %c0_23 = arith.constant 0 : index
    %47 = vector.load %arg1[%c0_22, %c0_23] : memref<128x128xf32, #tpu.memory_space<vmem>>, vector<64x128xf32>
    %cst_24 = arith.constant dense<0.000000e+00> : vector<16x128xf32>
    %48 = tpu.matmul %46, %47, %cst_24 {dimension_numbers = #tpu.dot_dimension_numbers<[1], [0], [0], [1], [0, 0, 1, 1], [], []>} : vector<16x64xf32>, vector<64x128xf32>, vector<16x128xf32> -> vector<16x128xf32>
    %c96_25 = arith.constant 96 : index
    %c0_26 = arith.constant 0 : index
    %49 = vector.load %arg1[%c96_25, %c0_26] : memref<128x128xf32, #tpu.memory_space<vmem>>, vector<16x128xf32>
    %50 = arith.addf %48, %49 : vector<16x128xf32>
    %51 = vector.extract_strided_slice %50 {offsets = [0, 0], sizes = [16, 32], strides = [1, 1]} : vector<16x128xf32> to vector<16x32xf32>
    %52 = arith.negf %51 : vector<16x32xf32>
    %53 = math.exp %52 : vector<16x32xf32>
    %cst_27 = arith.constant 1.000000e+00 : f32
    %54 = vector.broadcast %cst_27 : f32 to vector<16x32xf32>
    %55 = arith.addf %54, %53 : vector<16x32xf32>
    %56 = arith.divf %54, %55 : vector<16x32xf32>
    %57 = vector.extract_strided_slice %50 {offsets = [0, 32], sizes = [16, 32], strides = [1, 1]} : vector<16x128xf32> to vector<16x32xf32>
    %58 = arith.negf %57 : vector<16x32xf32>
    %59 = math.exp %58 : vector<16x32xf32>
    %cst_28 = arith.constant 1.000000e+00 : f32
    %60 = vector.broadcast %cst_28 : f32 to vector<16x32xf32>
    %61 = arith.addf %60, %59 : vector<16x32xf32>
    %62 = arith.divf %60, %61 : vector<16x32xf32>
    %63 = vector.extract_strided_slice %50 {offsets = [0, 64], sizes = [16, 32], strides = [1, 1]} : vector<16x128xf32> to vector<16x32xf32>
    %64 = vector.extract_strided_slice %50 {offsets = [0, 96], sizes = [16, 32], strides = [1, 1]} : vector<16x128xf32> to vector<16x32xf32>
    %65 = arith.mulf %56, %64 : vector<16x32xf32>
    %66 = arith.addf %63, %65 : vector<16x32xf32>
    %67 = math.tanh %66 : vector<16x32xf32>
    %cst_29 = arith.constant 1.000000e+00 : f32
    %68 = vector.broadcast %cst_29 : f32 to vector<16x32xf32>
    %69 = arith.subf %68, %62 : vector<16x32xf32>
    %70 = arith.mulf %69, %67 : vector<16x32xf32>
    %71 = arith.mulf %62, %39 : vector<16x32xf32>
    %72 = arith.addf %70, %71 : vector<16x32xf32>
    %c48 = arith.constant 48 : index
    %c0_30 = arith.constant 0 : index
    %73 = vector.load %arg0[%c48, %c0_30] : memref<80x128xf32, #tpu.memory_space<vmem>>, vector<16x32xf32>
    %cst_31 = arith.constant 1.000000e+00 : f32
    %74 = vector.broadcast %cst_31 : f32 to vector<16x32xf32>
    %75 = arith.subf %74, %73 : vector<16x32xf32>
    %76 = arith.mulf %39, %75 : vector<16x32xf32>
    %77 = arith.mulf %73, %72 : vector<16x32xf32>
    %78 = arith.addf %76, %77 : vector<16x32xf32>
    %c0_32 = arith.constant 0 : index
    %c0_33 = arith.constant 0 : index
    %79 = vector.load %arg0[%c0_32, %c0_33] : memref<80x128xf32, #tpu.memory_space<vmem>>, vector<16x16xf32>
    %c64_34 = arith.constant 64 : index
    %c0_35 = arith.constant 0 : index
    %80 = vector.load %arg1[%c64_34, %c0_35] : memref<128x128xf32, #tpu.memory_space<vmem>>, vector<32x32xf32>
    %c112_36 = arith.constant 112 : index
    %c0_37 = arith.constant 0 : index
    %81 = vector.load %arg1[%c112_36, %c0_37] : memref<128x128xf32, #tpu.memory_space<vmem>>, vector<16x32xf32>
    %cst_38 = arith.constant dense<0.000000e+00> : vector<16x32xf32>
    %82 = tpu.matmul %78, %80, %cst_38 {dimension_numbers = #tpu.dot_dimension_numbers<[1], [0], [0], [1], [0, 0, 1, 1], [], []>} : vector<16x32xf32>, vector<32x32xf32>, vector<16x32xf32> -> vector<16x32xf32>
    %83 = arith.addf %82, %81 : vector<16x32xf32>
    %cst_39 = arith.constant dense<0.000000e+00> : vector<16x32xf32>
    %84 = tpu.matmul %79, %83, %cst_39 {dimension_numbers = #tpu.dot_dimension_numbers<[1], [0], [0], [1], [0, 0, 1, 1], [], []>} : vector<16x16xf32>, vector<16x32xf32>, vector<16x32xf32> -> vector<16x32xf32>
    %85 = tpu.concatenate %84, %78 in 1 : vector<16x32xf32>, vector<16x32xf32> -> vector<16x64xf32>
    %c0_40 = arith.constant 0 : index
    %c0_41 = arith.constant 0 : index
    %86 = vector.load %arg1[%c0_40, %c0_41] : memref<128x128xf32, #tpu.memory_space<vmem>>, vector<64x128xf32>
    %cst_42 = arith.constant dense<0.000000e+00> : vector<16x128xf32>
    %87 = tpu.matmul %85, %86, %cst_42 {dimension_numbers = #tpu.dot_dimension_numbers<[1], [0], [0], [1], [0, 0, 1, 1], [], []>} : vector<16x64xf32>, vector<64x128xf32>, vector<16x128xf32> -> vector<16x128xf32>
    %c96_43 = arith.constant 96 : index
    %c0_44 = arith.constant 0 : index
    %88 = vector.load %arg1[%c96_43, %c0_44] : memref<128x128xf32, #tpu.memory_space<vmem>>, vector<16x128xf32>
    %89 = arith.addf %87, %88 : vector<16x128xf32>
    %90 = vector.extract_strided_slice %89 {offsets = [0, 0], sizes = [16, 32], strides = [1, 1]} : vector<16x128xf32> to vector<16x32xf32>
    %91 = arith.negf %90 : vector<16x32xf32>
    %92 = math.exp %91 : vector<16x32xf32>
    %cst_45 = arith.constant 1.000000e+00 : f32
    %93 = vector.broadcast %cst_45 : f32 to vector<16x32xf32>
    %94 = arith.addf %93, %92 : vector<16x32xf32>
    %95 = arith.divf %93, %94 : vector<16x32xf32>
    %96 = vector.extract_strided_slice %89 {offsets = [0, 32], sizes = [16, 32], strides = [1, 1]} : vector<16x128xf32> to vector<16x32xf32>
    %97 = arith.negf %96 : vector<16x32xf32>
    %98 = math.exp %97 : vector<16x32xf32>
    %cst_46 = arith.constant 1.000000e+00 : f32
    %99 = vector.broadcast %cst_46 : f32 to vector<16x32xf32>
    %100 = arith.addf %99, %98 : vector<16x32xf32>
    %101 = arith.divf %99, %100 : vector<16x32xf32>
    %102 = vector.extract_strided_slice %89 {offsets = [0, 64], sizes = [16, 32], strides = [1, 1]} : vector<16x128xf32> to vector<16x32xf32>
    %103 = vector.extract_strided_slice %89 {offsets = [0, 96], sizes = [16, 32], strides = [1, 1]} : vector<16x128xf32> to vector<16x32xf32>
    %104 = arith.mulf %95, %103 : vector<16x32xf32>
    %105 = arith.addf %102, %104 : vector<16x32xf32>
    %106 = math.tanh %105 : vector<16x32xf32>
    %cst_47 = arith.constant 1.000000e+00 : f32
    %107 = vector.broadcast %cst_47 : f32 to vector<16x32xf32>
    %108 = arith.subf %107, %101 : vector<16x32xf32>
    %109 = arith.mulf %108, %106 : vector<16x32xf32>
    %110 = arith.mulf %101, %78 : vector<16x32xf32>
    %111 = arith.addf %109, %110 : vector<16x32xf32>
    %c64_48 = arith.constant 64 : index
    %c0_49 = arith.constant 0 : index
    %112 = vector.load %arg0[%c64_48, %c0_49] : memref<80x128xf32, #tpu.memory_space<vmem>>, vector<16x32xf32>
    %cst_50 = arith.constant 1.000000e+00 : f32
    %113 = vector.broadcast %cst_50 : f32 to vector<16x32xf32>
    %114 = arith.subf %113, %112 : vector<16x32xf32>
    %115 = arith.mulf %78, %114 : vector<16x32xf32>
    %116 = arith.mulf %112, %111 : vector<16x32xf32>
    %117 = arith.addf %115, %116 : vector<16x32xf32>
    %c0_51 = arith.constant 0 : index
    %c0_52 = arith.constant 0 : index
    %118 = vector.load %arg0[%c0_51, %c0_52] : memref<80x128xf32, #tpu.memory_space<vmem>>, vector<16x16xf32>
    %c64_53 = arith.constant 64 : index
    %c0_54 = arith.constant 0 : index
    %119 = vector.load %arg1[%c64_53, %c0_54] : memref<128x128xf32, #tpu.memory_space<vmem>>, vector<32x32xf32>
    %c112_55 = arith.constant 112 : index
    %c0_56 = arith.constant 0 : index
    %120 = vector.load %arg1[%c112_55, %c0_56] : memref<128x128xf32, #tpu.memory_space<vmem>>, vector<16x32xf32>
    %cst_57 = arith.constant dense<0.000000e+00> : vector<16x32xf32>
    %121 = tpu.matmul %117, %119, %cst_57 {dimension_numbers = #tpu.dot_dimension_numbers<[1], [0], [0], [1], [0, 0, 1, 1], [], []>} : vector<16x32xf32>, vector<32x32xf32>, vector<16x32xf32> -> vector<16x32xf32>
    %122 = arith.addf %121, %120 : vector<16x32xf32>
    %cst_58 = arith.constant dense<0.000000e+00> : vector<16x32xf32>
    %123 = tpu.matmul %118, %122, %cst_58 {dimension_numbers = #tpu.dot_dimension_numbers<[1], [0], [0], [1], [0, 0, 1, 1], [], []>} : vector<16x16xf32>, vector<16x32xf32>, vector<16x32xf32> -> vector<16x32xf32>
    %124 = tpu.concatenate %123, %117 in 1 : vector<16x32xf32>, vector<16x32xf32> -> vector<16x64xf32>
    %c0_59 = arith.constant 0 : index
    %c0_60 = arith.constant 0 : index
    %125 = vector.load %arg1[%c0_59, %c0_60] : memref<128x128xf32, #tpu.memory_space<vmem>>, vector<64x128xf32>
    %cst_61 = arith.constant dense<0.000000e+00> : vector<16x128xf32>
    %126 = tpu.matmul %124, %125, %cst_61 {dimension_numbers = #tpu.dot_dimension_numbers<[1], [0], [0], [1], [0, 0, 1, 1], [], []>} : vector<16x64xf32>, vector<64x128xf32>, vector<16x128xf32> -> vector<16x128xf32>
    %c96_62 = arith.constant 96 : index
    %c0_63 = arith.constant 0 : index
    %127 = vector.load %arg1[%c96_62, %c0_63] : memref<128x128xf32, #tpu.memory_space<vmem>>, vector<16x128xf32>
    %128 = arith.addf %126, %127 : vector<16x128xf32>
    %129 = vector.extract_strided_slice %128 {offsets = [0, 0], sizes = [16, 32], strides = [1, 1]} : vector<16x128xf32> to vector<16x32xf32>
    %130 = arith.negf %129 : vector<16x32xf32>
    %131 = math.exp %130 : vector<16x32xf32>
    %cst_64 = arith.constant 1.000000e+00 : f32
    %132 = vector.broadcast %cst_64 : f32 to vector<16x32xf32>
    %133 = arith.addf %132, %131 : vector<16x32xf32>
    %134 = arith.divf %132, %133 : vector<16x32xf32>
    %135 = vector.extract_strided_slice %128 {offsets = [0, 32], sizes = [16, 32], strides = [1, 1]} : vector<16x128xf32> to vector<16x32xf32>
    %136 = arith.negf %135 : vector<16x32xf32>
    %137 = math.exp %136 : vector<16x32xf32>
    %cst_65 = arith.constant 1.000000e+00 : f32
    %138 = vector.broadcast %cst_65 : f32 to vector<16x32xf32>
    %139 = arith.addf %138, %137 : vector<16x32xf32>
    %140 = arith.divf %138, %139 : vector<16x32xf32>
    %141 = vector.extract_strided_slice %128 {offsets = [0, 64], sizes = [16, 32], strides = [1, 1]} : vector<16x128xf32> to vector<16x32xf32>
    %142 = vector.extract_strided_slice %128 {offsets = [0, 96], sizes = [16, 32], strides = [1, 1]} : vector<16x128xf32> to vector<16x32xf32>
    %143 = arith.mulf %134, %142 : vector<16x32xf32>
    %144 = arith.addf %141, %143 : vector<16x32xf32>
    %145 = math.tanh %144 : vector<16x32xf32>
    %cst_66 = arith.constant 1.000000e+00 : f32
    %146 = vector.broadcast %cst_66 : f32 to vector<16x32xf32>
    %147 = arith.subf %146, %140 : vector<16x32xf32>
    %148 = arith.mulf %147, %145 : vector<16x32xf32>
    %149 = arith.mulf %140, %117 : vector<16x32xf32>
    %150 = arith.addf %148, %149 : vector<16x32xf32>
    %c32_67 = arith.constant 32 : index
    %c0_68 = arith.constant 0 : index
    %151 = vector.load %arg0[%c32_67, %c0_68] : memref<80x128xf32, #tpu.memory_space<vmem>>, vector<16x32xf32>
    %cst_69 = arith.constant 1.000000e+00 : f32
    %152 = vector.broadcast %cst_69 : f32 to vector<16x32xf32>
    %153 = arith.subf %152, %151 : vector<16x32xf32>
    %154 = arith.mulf %117, %153 : vector<16x32xf32>
    %155 = arith.mulf %151, %150 : vector<16x32xf32>
    %156 = arith.addf %154, %155 : vector<16x32xf32>
    %c0_70 = arith.constant 0 : index
    %c0_71 = arith.constant 0 : index
    %157 = vector.load %arg0[%c0_70, %c0_71] : memref<80x128xf32, #tpu.memory_space<vmem>>, vector<16x16xf32>
    %c64_72 = arith.constant 64 : index
    %c0_73 = arith.constant 0 : index
    %158 = vector.load %arg1[%c64_72, %c0_73] : memref<128x128xf32, #tpu.memory_space<vmem>>, vector<32x32xf32>
    %c112_74 = arith.constant 112 : index
    %c0_75 = arith.constant 0 : index
    %159 = vector.load %arg1[%c112_74, %c0_75] : memref<128x128xf32, #tpu.memory_space<vmem>>, vector<16x32xf32>
    %cst_76 = arith.constant dense<0.000000e+00> : vector<16x32xf32>
    %160 = tpu.matmul %156, %158, %cst_76 {dimension_numbers = #tpu.dot_dimension_numbers<[1], [0], [0], [1], [0, 0, 1, 1], [], []>} : vector<16x32xf32>, vector<32x32xf32>, vector<16x32xf32> -> vector<16x32xf32>
    %161 = arith.addf %160, %159 : vector<16x32xf32>
    %cst_77 = arith.constant dense<0.000000e+00> : vector<16x32xf32>
    %162 = tpu.matmul %157, %161, %cst_77 {dimension_numbers = #tpu.dot_dimension_numbers<[1], [0], [0], [1], [0, 0, 1, 1], [], []>} : vector<16x16xf32>, vector<16x32xf32>, vector<16x32xf32> -> vector<16x32xf32>
    %163 = tpu.concatenate %162, %156 in 1 : vector<16x32xf32>, vector<16x32xf32> -> vector<16x64xf32>
    %c0_78 = arith.constant 0 : index
    %c0_79 = arith.constant 0 : index
    %164 = vector.load %arg1[%c0_78, %c0_79] : memref<128x128xf32, #tpu.memory_space<vmem>>, vector<64x128xf32>
    %cst_80 = arith.constant dense<0.000000e+00> : vector<16x128xf32>
    %165 = tpu.matmul %163, %164, %cst_80 {dimension_numbers = #tpu.dot_dimension_numbers<[1], [0], [0], [1], [0, 0, 1, 1], [], []>} : vector<16x64xf32>, vector<64x128xf32>, vector<16x128xf32> -> vector<16x128xf32>
    %c96_81 = arith.constant 96 : index
    %c0_82 = arith.constant 0 : index
    %166 = vector.load %arg1[%c96_81, %c0_82] : memref<128x128xf32, #tpu.memory_space<vmem>>, vector<16x128xf32>
    %167 = arith.addf %165, %166 : vector<16x128xf32>
    %168 = vector.extract_strided_slice %167 {offsets = [0, 0], sizes = [16, 32], strides = [1, 1]} : vector<16x128xf32> to vector<16x32xf32>
    %169 = arith.negf %168 : vector<16x32xf32>
    %170 = math.exp %169 : vector<16x32xf32>
    %cst_83 = arith.constant 1.000000e+00 : f32
    %171 = vector.broadcast %cst_83 : f32 to vector<16x32xf32>
    %172 = arith.addf %171, %170 : vector<16x32xf32>
    %173 = arith.divf %171, %172 : vector<16x32xf32>
    %174 = vector.extract_strided_slice %167 {offsets = [0, 32], sizes = [16, 32], strides = [1, 1]} : vector<16x128xf32> to vector<16x32xf32>
    %175 = arith.negf %174 : vector<16x32xf32>
    %176 = math.exp %175 : vector<16x32xf32>
    %cst_84 = arith.constant 1.000000e+00 : f32
    %177 = vector.broadcast %cst_84 : f32 to vector<16x32xf32>
    %178 = arith.addf %177, %176 : vector<16x32xf32>
    %179 = arith.divf %177, %178 : vector<16x32xf32>
    %180 = vector.extract_strided_slice %167 {offsets = [0, 64], sizes = [16, 32], strides = [1, 1]} : vector<16x128xf32> to vector<16x32xf32>
    %181 = vector.extract_strided_slice %167 {offsets = [0, 96], sizes = [16, 32], strides = [1, 1]} : vector<16x128xf32> to vector<16x32xf32>
    %182 = arith.mulf %173, %181 : vector<16x32xf32>
    %183 = arith.addf %180, %182 : vector<16x32xf32>
    %184 = math.tanh %183 : vector<16x32xf32>
    %cst_85 = arith.constant 1.000000e+00 : f32
    %185 = vector.broadcast %cst_85 : f32 to vector<16x32xf32>
    %186 = arith.subf %185, %179 : vector<16x32xf32>
    %187 = arith.mulf %186, %184 : vector<16x32xf32>
    %188 = arith.mulf %179, %156 : vector<16x32xf32>
    %189 = arith.addf %187, %188 : vector<16x32xf32>
    %c48_86 = arith.constant 48 : index
    %c0_87 = arith.constant 0 : index
    %190 = vector.load %arg0[%c48_86, %c0_87] : memref<80x128xf32, #tpu.memory_space<vmem>>, vector<16x32xf32>
    %cst_88 = arith.constant 1.000000e+00 : f32
    %191 = vector.broadcast %cst_88 : f32 to vector<16x32xf32>
    %192 = arith.subf %191, %190 : vector<16x32xf32>
    %193 = arith.mulf %156, %192 : vector<16x32xf32>
    %194 = arith.mulf %190, %189 : vector<16x32xf32>
    %195 = arith.addf %193, %194 : vector<16x32xf32>
    %c0_89 = arith.constant 0 : index
    %c0_90 = arith.constant 0 : index
    %196 = vector.load %arg0[%c0_89, %c0_90] : memref<80x128xf32, #tpu.memory_space<vmem>>, vector<16x16xf32>
    %c64_91 = arith.constant 64 : index
    %c0_92 = arith.constant 0 : index
    %197 = vector.load %arg1[%c64_91, %c0_92] : memref<128x128xf32, #tpu.memory_space<vmem>>, vector<32x32xf32>
    %c112_93 = arith.constant 112 : index
    %c0_94 = arith.constant 0 : index
    %198 = vector.load %arg1[%c112_93, %c0_94] : memref<128x128xf32, #tpu.memory_space<vmem>>, vector<16x32xf32>
    %cst_95 = arith.constant dense<0.000000e+00> : vector<16x32xf32>
    %199 = tpu.matmul %195, %197, %cst_95 {dimension_numbers = #tpu.dot_dimension_numbers<[1], [0], [0], [1], [0, 0, 1, 1], [], []>} : vector<16x32xf32>, vector<32x32xf32>, vector<16x32xf32> -> vector<16x32xf32>
    %200 = arith.addf %199, %198 : vector<16x32xf32>
    %cst_96 = arith.constant dense<0.000000e+00> : vector<16x32xf32>
    %201 = tpu.matmul %196, %200, %cst_96 {dimension_numbers = #tpu.dot_dimension_numbers<[1], [0], [0], [1], [0, 0, 1, 1], [], []>} : vector<16x16xf32>, vector<16x32xf32>, vector<16x32xf32> -> vector<16x32xf32>
    %202 = tpu.concatenate %201, %195 in 1 : vector<16x32xf32>, vector<16x32xf32> -> vector<16x64xf32>
    %c0_97 = arith.constant 0 : index
    %c0_98 = arith.constant 0 : index
    %203 = vector.load %arg1[%c0_97, %c0_98] : memref<128x128xf32, #tpu.memory_space<vmem>>, vector<64x128xf32>
    %cst_99 = arith.constant dense<0.000000e+00> : vector<16x128xf32>
    %204 = tpu.matmul %202, %203, %cst_99 {dimension_numbers = #tpu.dot_dimension_numbers<[1], [0], [0], [1], [0, 0, 1, 1], [], []>} : vector<16x64xf32>, vector<64x128xf32>, vector<16x128xf32> -> vector<16x128xf32>
    %c96_100 = arith.constant 96 : index
    %c0_101 = arith.constant 0 : index
    %205 = vector.load %arg1[%c96_100, %c0_101] : memref<128x128xf32, #tpu.memory_space<vmem>>, vector<16x128xf32>
    %206 = arith.addf %204, %205 : vector<16x128xf32>
    %207 = vector.extract_strided_slice %206 {offsets = [0, 0], sizes = [16, 32], strides = [1, 1]} : vector<16x128xf32> to vector<16x32xf32>
    %208 = arith.negf %207 : vector<16x32xf32>
    %209 = math.exp %208 : vector<16x32xf32>
    %cst_102 = arith.constant 1.000000e+00 : f32
    %210 = vector.broadcast %cst_102 : f32 to vector<16x32xf32>
    %211 = arith.addf %210, %209 : vector<16x32xf32>
    %212 = arith.divf %210, %211 : vector<16x32xf32>
    %213 = vector.extract_strided_slice %206 {offsets = [0, 32], sizes = [16, 32], strides = [1, 1]} : vector<16x128xf32> to vector<16x32xf32>
    %214 = arith.negf %213 : vector<16x32xf32>
    %215 = math.exp %214 : vector<16x32xf32>
    %cst_103 = arith.constant 1.000000e+00 : f32
    %216 = vector.broadcast %cst_103 : f32 to vector<16x32xf32>
    %217 = arith.addf %216, %215 : vector<16x32xf32>
    %218 = arith.divf %216, %217 : vector<16x32xf32>
    %219 = vector.extract_strided_slice %206 {offsets = [0, 64], sizes = [16, 32], strides = [1, 1]} : vector<16x128xf32> to vector<16x32xf32>
    %220 = vector.extract_strided_slice %206 {offsets = [0, 96], sizes = [16, 32], strides = [1, 1]} : vector<16x128xf32> to vector<16x32xf32>
    %221 = arith.mulf %212, %220 : vector<16x32xf32>
    %222 = arith.addf %219, %221 : vector<16x32xf32>
    %223 = math.tanh %222 : vector<16x32xf32>
    %cst_104 = arith.constant 1.000000e+00 : f32
    %224 = vector.broadcast %cst_104 : f32 to vector<16x32xf32>
    %225 = arith.subf %224, %218 : vector<16x32xf32>
    %226 = arith.mulf %225, %223 : vector<16x32xf32>
    %227 = arith.mulf %218, %195 : vector<16x32xf32>
    %228 = arith.addf %226, %227 : vector<16x32xf32>
    %c64_105 = arith.constant 64 : index
    %c0_106 = arith.constant 0 : index
    %229 = vector.load %arg0[%c64_105, %c0_106] : memref<80x128xf32, #tpu.memory_space<vmem>>, vector<16x32xf32>
    %cst_107 = arith.constant 1.000000e+00 : f32
    %230 = vector.broadcast %cst_107 : f32 to vector<16x32xf32>
    %231 = arith.subf %230, %229 : vector<16x32xf32>
    %232 = arith.mulf %195, %231 : vector<16x32xf32>
    %233 = arith.mulf %229, %228 : vector<16x32xf32>
    %234 = arith.addf %232, %233 : vector<16x32xf32>
    %c112_108 = arith.constant 112 : index
    %c0_109 = arith.constant 0 : index
    %235 = vector.load %arg1[%c112_108, %c0_109] : memref<128x128xf32, #tpu.memory_space<vmem>>, vector<16x128xf32>
    %c64_110 = arith.constant 64 : index
    %c32_111 = arith.constant 32 : index
    %236 = vector.load %arg1[%c64_110, %c32_111] : memref<128x128xf32, #tpu.memory_space<vmem>>, vector<32x32xf32>
    %cst_112 = arith.constant dense<0.000000e+00> : vector<16x32xf32>
    %237 = tpu.matmul %234, %236, %cst_112 {dimension_numbers = #tpu.dot_dimension_numbers<[1], [0], [0], [1], [0, 0, 1, 1], [], []>} : vector<16x32xf32>, vector<32x32xf32>, vector<16x32xf32> -> vector<16x32xf32>
    %238 = vector.extract_strided_slice %235 {offsets = [0, 32], sizes = [16, 32], strides = [1, 1]} : vector<16x128xf32> to vector<16x32xf32>
    %239 = arith.addf %237, %238 : vector<16x32xf32>
    %cst_113 = arith.constant 0.000000e+00 : f32
    %240 = vector.broadcast %cst_113 : f32 to vector<16x32xf32>
    %241 = arith.maximumf %239, %240 : vector<16x32xf32>
    %c64_114 = arith.constant 64 : index
    %c64_115 = arith.constant 64 : index
    %242 = vector.load %arg1[%c64_114, %c64_115] : memref<128x128xf32, #tpu.memory_space<vmem>>, vector<32x32xf32>
    %cst_116 = arith.constant dense<0.000000e+00> : vector<16x32xf32>
    %243 = tpu.matmul %241, %242, %cst_116 {dimension_numbers = #tpu.dot_dimension_numbers<[1], [0], [0], [1], [0, 0, 1, 1], [], []>} : vector<16x32xf32>, vector<32x32xf32>, vector<16x32xf32> -> vector<16x32xf32>
    %244 = vector.extract_strided_slice %235 {offsets = [0, 64], sizes = [16, 32], strides = [1, 1]} : vector<16x128xf32> to vector<16x32xf32>
    %245 = arith.addf %243, %244 : vector<16x32xf32>
    %cst_117 = arith.constant 0.000000e+00 : f32
    %246 = vector.broadcast %cst_117 : f32 to vector<16x32xf32>
    %247 = arith.maximumf %245, %246 : vector<16x32xf32>
    %c64_118 = arith.constant 64 : index
    %c96_119 = arith.constant 96 : index
    %248 = vector.load %arg1[%c64_118, %c96_119] : memref<128x128xf32, #tpu.memory_space<vmem>>, vector<32x32xf32>
    %cst_120 = arith.constant dense<0.000000e+00> : vector<16x32xf32>
    %249 = tpu.matmul %247, %248, %cst_120 {dimension_numbers = #tpu.dot_dimension_numbers<[1], [0], [0], [1], [0, 0, 1, 1], [], []>} : vector<16x32xf32>, vector<32x32xf32>, vector<16x32xf32> -> vector<16x32xf32>
    %250 = vector.extract_strided_slice %235 {offsets = [0, 96], sizes = [16, 32], strides = [1, 1]} : vector<16x128xf32> to vector<16x32xf32>
    %251 = arith.addf %249, %250 : vector<16x32xf32>
    %cst_121 = arith.constant 0.000000e+00 : f32
    %252 = vector.broadcast %cst_121 : f32 to vector<16x64xf32>
    %253 = tpu.concatenate %234, %251, %252 in 1 : vector<16x32xf32>, vector<16x32xf32>, vector<16x64xf32> -> vector<16x128xf32>
    %c0_122 = arith.constant 0 : index
    %c0_123 = arith.constant 0 : index
    %254 = vector.load %arg2[%c0_122, %c0_123] : memref<16x128xf32, #tpu.memory_space<vmem>>, vector<16x128xf32>
    tpu.vector_store %arg2[%c0_122, %c0_123], %253 {strides = array<i32>} : memref<16x128xf32, #tpu.memory_space<vmem>>, vector<16x128xf32>,
    return
  }
}

</mosaic_0001>

<llo_original>
// kernel: tpu_custom_call.1
$region0: #{tpu_custom_call.1}
  #allocation0 [shape = 'u32[]', space=smem, size = 0x4, offset = 0x4, fixed_abs, tag = 'smem constant byte address 0x4 - core index']
  #allocation1 [shape = 'u32[144,128]{1,0:T(1,128)}', space=vmem, size = 0x12000, scoped, tag = 'internal scratch']
  %s0 = inlined_call_operand.hbm [shape: f32[80,128], index: 0, kind: input, shape index: {}]
  %s1 = inlined_call_operand.hbm [shape: f32[128,128], index: 1, kind: input, shape index: {}]
  %s2 = inlined_call_operand.hbm [shape: f32[16,128], index: 2, kind: output, shape index: {}]
  %s3 = sld [smem:[#allocation0]]
  $region26: #{tpu_custom_call.1} parent=0
    _
  %s5 = ssub.s32 1, %s3
  %s6 = scalar_select 0, %s5, %s3
  $region1: #{tpu_custom_call.1} parent=0
    #allocation2 [shape = 'u8[40960]{0}', space=vmem, size = 0xa000, scoped, tag = 'input window, operand 0, single buffered']
    #allocation3 [shape = 's32[1]{0}', space=sflag, size = 0x4, scoped, tag = 'scoped memory for tpu_custom_call.1']
    #allocation4 [shape = 's32[1]{0}', space=sflag, size = 0x4, scoped, tag = 'scoped memory for tpu_custom_call.1']
    #allocation5 [shape = 'u8[65536]{0}', space=vmem, size = 0x10000, scoped, tag = 'input window, operand 1, single buffered']
    #allocation6 [shape = 's32[1]{0}', space=sflag, size = 0x4, scoped, tag = 'scoped memory for tpu_custom_call.1']
    #allocation7 [shape = 'u8[8192]{0}', space=vmem, size = 0x2000, scoped, tag = 'output window, operand 0, single buffered']
    %7 = vsyncpa [#allocation3], 0
    %8 = vsyncpa [#allocation6], 0
    %9 = vsyncpa [#allocation4], 0
    // Predicated region
    $region2: #{tpu_custom_call.1} parent=1 // pred_check
      _
    $region3: #{tpu_custom_call.1} parent=1 // pred_check_branch
      %11 = sbr.rel (0) target = $region5
    $region4: #{tpu_custom_call.1} parent=1 // pred_region
      %s13 = ssub.s32 1280, 1280
      %14 = vsyncadd [#allocation3], %s13
      %s15 = sshll.u32 [#allocation2], 4
      %s16 = int_to_ptr.vmem [resolvable:$true] %s15
      %21 = dma.hbm_to_vmem [thread:$0]  %s0, 1280, %s16, [#allocation3], 128, 128, 8
    $region5: #{tpu_custom_call.1} parent=1 // pred_fallthru
      _
    // Predicated region
    $region6: #{tpu_custom_call.1} parent=1 // pred_check
      _
    $region7: #{tpu_custom_call.1} parent=1 // pred_check_branch
      %23 = sbr.rel (0) target = $region9
    $region8: #{tpu_custom_call.1} parent=1 // pred_region
      %s25 = ssub.s32 2048, 2048
      %26 = vsyncadd [#allocation6], %s25
      %s27 = sshll.u32 [#allocation5], 4
      %s28 = int_to_ptr.vmem [resolvable:$true] %s27
      %33 = dma.hbm_to_vmem [thread:$0]  %s1, 2048, %s28, [#allocation6], 128, 128, 8
    $region9: #{tpu_custom_call.1} parent=1 // pred_fallthru
      _
    // Predicated region
    $region10: #{tpu_custom_call.1} parent=1 // pred_check
      _
    $region11: #{tpu_custom_call.1} parent=1 // pred_check_branch
      %35 = sbr.rel (0) target = $region13
    $region12: #{tpu_custom_call.1} parent=1 // pred_region
      %36 = dma.done [#allocation3], 1280
    $region13: #{tpu_custom_call.1} parent=1 // pred_fallthru
      _
    // Predicated region
    $region14: #{tpu_custom_call.1} parent=1 // pred_check
      _
    $region15: #{tpu_custom_call.1} parent=1 // pred_check_branch
      %38 = sbr.rel (0) target = $region17
    $region16: #{tpu_custom_call.1} parent=1 // pred_region
      %39 = dma.done [#allocation6], 2048
    $region17: #{tpu_custom_call.1} parent=1 // pred_fallthru
      _
    %v40 = vld [vmem:[#allocation2 + $0x10] sm:$0xff]
    %v41 = vld [vmem:[#allocation2 + $0x18] sm:$0xff]
    %v42 = vld [vmem:[#allocation2] sm:$0xff]
    %v43 = vld [vmem:[#allocation2 + $0x8] sm:$0xff]
    %v44 = vld [vmem:[#allocation5 + $0x40] sm:$0xff]
    %v45 = vld [vmem:[#allocation5 + $0x48] sm:$0xff]
    %v46 = vld [vmem:[#allocation5 + $0x50] sm:$0xff]
    %v47 = vld [vmem:[#allocation5 + $0x58] sm:$0xff]
    %v48 = vld [vmem:[#allocation5 + $0x70] sm:$0xff]
    %v49 = vld [vmem:[#allocation5 + $0x78] sm:$0xff]
    %vm50 = vcmask 261120
    %v52 = vsel %vm50, %v40, 0
    %v55 = vsel %vm50, %v41, 0
    %57 = vmatprep.subr.mxu0 0.0
    %58 = vmatpush1.msra.mxu0 %v44
    %59 = vmatprep.subr.mxu0 0.0
    %60 = vmatpush1.msra.mxu0 %v45
    %61 = vmatprep.subr.mxu0 0.0
    %62 = vmatpush1.msra.mxu0 %v46
    %63 = vmatprep.subr.mxu0 0.0
    %64 = vmatpush1.msra.mxu0 %v47
    %65 = vmatprep.subr.mxu0 0.0
    %66 = vmatpush1.msra.mxu0 0.0
    %67 = vmatprep.subr.mxu0 0.0
    %68 = vmatpush1.msra.mxu0 0.0
    %69 = vmatprep.subr.mxu0 0.0
    %70 = vmatpush1.msra.mxu0 0.0
    %71 = vmatprep.subr.mxu0 0.0
    %72 = vmatpush1.msra.mxu0 0.0
    %73 = vmatprep.subr.mxu0 0.0
    %74 = vmatpush1.msra.mxu0 0.0
    %75 = vmatprep.subr.mxu0 0.0
    %76 = vmatpush1.msra.mxu0 0.0
    %77 = vmatprep.subr.mxu0 0.0
    %78 = vmatpush1.msra.mxu0 0.0
    %79 = vmatprep.subr.mxu0 0.0
    %80 = vmatpush1.msra.mxu0 0.0
    %81 = vmatprep.subr.mxu0 0.0
    %82 = vmatpush1.msra.mxu0 0.0
    %83 = vmatprep.subr.mxu0 0.0
    %84 = vmatpush1.msra.mxu0 0.0
    %85 = vmatprep.subr.mxu0 0.0
    %86 = vmatpush1.msra.mxu0 0.0
    %87 = vmatprep.subr.mxu0 0.0
    %88 = vmatpush1.msra.mxu0 0.0
    %89 = vmatprep.subr.mxu0 0.0
    %90 = vmatpush1.msra.mxu0 0.0
    %91 = vmatprep.subr.mxu0 0.0
    %92 = vmatpush1.msra.mxu0 0.0
    %93 = vmatprep.subr.mxu0 0.0
    %94 = vmatpush1.msra.mxu0 0.0
    %95 = vmatprep.subr.mxu0 0.0
    %96 = vmatpush1.msra.mxu0 0.0
    %97 = vmatprep.subr.mxu0 0.0
    %98 = vmatpush1.msra.mxu0 0.0
    %99 = vmatprep.subr.mxu0 0.0
    %100 = vmatpush1.msra.mxu0 0.0
    %101 = vmatprep.subr.mxu0 0.0
    %102 = vmatpush1.msra.mxu0 0.0
    %103 = vmatprep.subr.mxu0 0.0
    %104 = vmatpush1.msra.mxu0 0.0
    %105 = vmatprep.subr.mxu0 0.0
    %106 = vmatpush1.msra.mxu0 0.0
    %107 = vmatprep.subr.mxu0 0.0
    %108 = vmatpush1.msra.mxu0 0.0
    %109 = vmatprep.subr.mxu0 0.0
    %110 = vmatpush1.msra.mxu0 0.0
    %111 = vmatprep.subr.mxu0 0.0
    %112 = vmatpush1.msra.mxu0 0.0
    %113 = vmatprep.subr.mxu0 0.0
    %114 = vmatpush1.msra.mxu0 0.0
    %115 = vmatprep.subr.mxu0 0.0
    %116 = vmatpush1.msra.mxu0 0.0
    %117 = vmatprep.subr.mxu0 0.0
    %118 = vmatpush1.msra.mxu0 0.0
    %119 = vmatprep.subr.mxu0 0.0
    %120 = vmatpush1.msra.mxu0 0.0
    %121 = vmatprep.mubr.f32.mxu0 0.0
    %122 = vmatmul.mubr.f32.gmra.mrb[0].mxu0 %v52
    %v123 = vpop.f32.mrb[0].mxu0
    %v124 = vadd.f32 %v48, %v123
    %v125 = vpop.f32.mrb[0].mxu0
    %126 = vmatprep.mubr.f32.mxu0 0.0
    %127 = vmatmul.mubr.f32.gmra.mrb[0].mxu0 %v55
    %v128 = vpop.f32.mrb[0].mxu0
    %v129 = vadd.f32 %v49, %v128
    %v130 = vpop.f32.mrb[0].mxu0
    %131 = vdwg.mxu0
    %vm132 = vcmask 130048
    %v134 = vsel %vm132, %v42, 0
    %v137 = vsel %vm132, %v43, 0
    %139 = vmatprep.subr.mxu0 0.0
    %140 = vmatpush1.msra.mxu0 %v124
    %141 = vmatprep.subr.mxu0 0.0
    %142 = vmatpush1.msra.mxu0 %v129
    %143 = vmatprep.subr.mxu0 0.0
    %144 = vmatpush1.msra.mxu0 0.0
    %145 = vmatprep.subr.mxu0 0.0
    %146 = vmatpush1.msra.mxu0 0.0
    %147 = vmatprep.subr.mxu0 0.0
    %148 = vmatpush1.msra.mxu0 0.0
    %149 = vmatprep.subr.mxu0 0.0
    %150 = vmatpush1.msra.mxu0 0.0
    %151 = vmatprep.subr.mxu0 0.0
    %152 = vmatpush1.msra.mxu0 0.0
    %153 = vmatprep.subr.mxu0 0.0
    %154 = vmatpush1.msra.mxu0 0.0
    %155 = vmatprep.subr.mxu0 0.0
    %156 = vmatpush1.msra.mxu0 0.0
    %157 = vmatprep.subr.mxu0 0.0
    %158 = vmatpush1.msra.mxu0 0.0
    %159 = vmatprep.subr.mxu0 0.0
    %160 = vmatpush1.msra.mxu0 0.0
    %161 = vmatprep.subr.mxu0 0.0
    %162 = vmatpush1.msra.mxu0 0.0
    %163 = vmatprep.subr.mxu0 0.0
    %164 = vmatpush1.msra.mxu0 0.0
    %165 = vmatprep.subr.mxu0 0.0
    %166 = vmatpush1.msra.mxu0 0.0
    %167 = vmatprep.subr.mxu0 0.0
    %168 = vmatpush1.msra.mxu0 0.0
    %169 = vmatprep.subr.mxu0 0.0
    %170 = vmatpush1.msra.mxu0 0.0
    %171 = vmatprep.subr.mxu0 0.0
    %172 = vmatpush1.msra.mxu0 0.0
    %173 = vmatprep.subr.mxu0 0.0
    %174 = vmatpush1.msra.mxu0 0.0
    %175 = vmatprep.subr.mxu0 0.0
    %176 = vmatpush1.msra.mxu0 0.0
    %177 = vmatprep.subr.mxu0 0.0
    %178 = vmatpush1.msra.mxu0 0.0
    %179 = vmatprep.subr.mxu0 0.0
    %180 = vmatpush1.msra.mxu0 0.0
    %181 = vmatprep.subr.mxu0 0.0
    %182 = vmatpush1.msra.mxu0 0.0
    %183 = vmatprep.subr.mxu0 0.0
    %184 = vmatpush1.msra.mxu0 0.0
    %185 = vmatprep.subr.mxu0 0.0
    %186 = vmatpush1.msra.mxu0 0.0
    %187 = vmatprep.subr.mxu0 0.0
    %188 = vmatpush1.msra.mxu0 0.0
    %189 = vmatprep.subr.mxu0 0.0
    %190 = vmatpush1.msra.mxu0 0.0
    %191 = vmatprep.subr.mxu0 0.0
    %192 = vmatpush1.msra.mxu0 0.0
    %193 = vmatprep.subr.mxu0 0.0
    %194 = vmatpush1.msra.mxu0 0.0
    %195 = vmatprep.subr.mxu0 0.0
    %196 = vmatpush1.msra.mxu0 0.0
    %197 = vmatprep.subr.mxu0 0.0
    %198 = vmatpush1.msra.mxu0 0.0
    %199 = vmatprep.subr.mxu0 0.0
    %200 = vmatpush1.msra.mxu0 0.0
    %201 = vmatprep.subr.mxu0 0.0
    %202 = vmatpush1.msra.mxu0 0.0
    %203 = vmatprep.mubr.f32.mxu0 0.0
    %204 = vmatmul.mubr.f32.gmra.mrb[0].mxu0 %v134
    %v205 = vpop.f32.mrb[0].mxu0
    %v206 = vadd.f32 0.0, %v205
    %v207 = vpop.f32.mrb[0].mxu0
    %208 = vmatprep.mubr.f32.mxu0 0.0
    %209 = vmatmul.mubr.f32.gmra.mrb[0].mxu0 %v137
    %v210 = vpop.f32.mrb[0].mxu0
    %v211 = vadd.f32 0.0, %v210
    %v212 = vpop.f32.mrb[0].mxu0
    %213 = vdwg.mxu0
    %214 = vrot.lane.b32.xlu0 %v40, 32
    %v215 = vpop.permute.xlu0 %214
    %216 = vrot.lane.b32.xlu0 %v41, 32
    %v217 = vpop.permute.xlu0 %216
    %v220 = vsel %vm50, %v206, %v215
    %v221 = vsel %vm50, %v211, %v217
    %v222 = vld [vmem:[#allocation5] sm:$0xff]
    %v223 = vld [vmem:[#allocation5 + $0x8] sm:$0xff]
    %v224 = vld [vmem:[#allocation5 + $0x10] sm:$0xff]
    %v225 = vld [vmem:[#allocation5 + $0x18] sm:$0xff]
    %v226 = vld [vmem:[#allocation5 + $0x20] sm:$0xff]
    %v227 = vld [vmem:[#allocation5 + $0x28] sm:$0xff]
    %v228 = vld [vmem:[#allocation5 + $0x30] sm:$0xff]
    %v229 = vld [vmem:[#allocation5 + $0x38] sm:$0xff]
    %v230 = vld [vmem:[#allocation5 + $0x60] sm:$0xff]
    %v231 = vld [vmem:[#allocation5 + $0x68] sm:$0xff]
    %vm232 = vcmask 523264
    %v234 = vsel %vm232, %v220, 0
    %v237 = vsel %vm232, %v221, 0
    %239 = vmatprep.subr.mxu0 0.0
    %240 = vmatpush1.msra.mxu0 %v222
    %241 = vmatprep.subr.mxu0 0.0
    %242 = vmatpush1.msra.mxu0 %v223
    %243 = vmatprep.subr.mxu0 0.0
    %244 = vmatpush1.msra.mxu0 %v224
    %245 = vmatprep.subr.mxu0 0.0
    %246 = vmatpush1.msra.mxu0 %v225
    %247 = vmatprep.subr.mxu0 0.0
    %248 = vmatpush1.msra.mxu0 %v226
    %249 = vmatprep.subr.mxu0 0.0
    %250 = vmatpush1.msra.mxu0 %v227
    %251 = vmatprep.subr.mxu0 0.0
    %252 = vmatpush1.msra.mxu0 %v228
    %253 = vmatprep.subr.mxu0 0.0
    %254 = vmatpush1.msra.mxu0 %v229
    %255 = vmatprep.subr.mxu0 0.0
    %256 = vmatpush1.msra.mxu0 0.0
    %257 = vmatprep.subr.mxu0 0.0
    %258 = vmatpush1.msra.mxu0 0.0
    %259 = vmatprep.subr.mxu0 0.0
    %260 = vmatpush1.msra.mxu0 0.0
    %261 = vmatprep.subr.mxu0 0.0
    %262 = vmatpush1.msra.mxu0 0.0
    %263 = vmatprep.subr.mxu0 0.0
    %264 = vmatpush1.msra.mxu0 0.0
    %265 = vmatprep.subr.mxu0 0.0
    %266 = vmatpush1.msra.mxu0 0.0
    %267 = vmatprep.subr.mxu0 0.0
    %268 = vmatpush1.msra.mxu0 0.0
    %269 = vmatprep.subr.mxu0 0.0
    %270 = vmatpush1.msra.mxu0 0.0
    %271 = vmatprep.subr.mxu0 0.0
    %272 = vmatpush1.msra.mxu0 0.0
    %273 = vmatprep.subr.mxu0 0.0
    %274 = vmatpush1.msra.mxu0 0.0
    %275 = vmatprep.subr.mxu0 0.0
    %276 = vmatpush1.msra.mxu0 0.0
    %277 = vmatprep.subr.mxu0 0.0
    %278 = vmatpush1.msra.mxu0 0.0
    %279 = vmatprep.subr.mxu0 0.0
    %280 = vmatpush1.msra.mxu0 0.0
    %281 = vmatprep.subr.mxu0 0.0
    %282 = vmatpush1.msra.mxu0 0.0
    %283 = vmatprep.subr.mxu0 0.0
    %284 = vmatpush1.msra.mxu0 0.0
    %285 = vmatprep.subr.mxu0 0.0
    %286 = vmatpush1.msra.mxu0 0.0
    %287 = vmatprep.subr.mxu0 0.0
    %288 = vmatpush1.msra.mxu0 0.0
    %289 = vmatprep.subr.mxu0 0.0
    %290 = vmatpush1.msra.mxu0 0.0
    %291 = vmatprep.subr.mxu0 0.0
    %292 = vmatpush1.msra.mxu0 0.0
    %293 = vmatprep.subr.mxu0 0.0
    %294 = vmatpush1.msra.mxu0 0.0
    %295 = vmatprep.subr.mxu0 0.0
    %296 = vmatpush1.msra.mxu0 0.0
    %297 = vmatprep.subr.mxu0 0.0
    %298 = vmatpush1.msra.mxu0 0.0
    %299 = vmatprep.subr.mxu0 0.0
    %300 = vmatpush1.msra.mxu0 0.0
    %301 = vmatprep.subr.mxu0 0.0
    %302 = vmatpush1.msra.mxu0 0.0
    %303 = vmatprep.mubr.f32.mxu0 0.0
    %304 = vmatmul.mubr.f32.gmra.mrb[0].mxu0 %v234
    %v305 = vpop.f32.mrb[0].mxu0
    %v306 = vadd.f32 %v230, %v305
    %v307 = vpop.f32.mrb[0].mxu0
    %308 = vmatprep.mubr.f32.mxu0 0.0
    %309 = vmatmul.mubr.f32.gmra.mrb[0].mxu0 %v237
    %v310 = vpop.f32.mrb[0].mxu0
    %v311 = vadd.f32 %v231, %v310
    %v312 = vpop.f32.mrb[0].mxu0
    %313 = vdwg.mxu0
    %v314 = vxor.u32 %v306, 2147483648
    %v315 = vxor.u32 %v311, 2147483648
    %v316 = vmul.f32 %v314, 1.442695
    %v317 = vpow.pop %v316
    %v318 = vmul.f32 %v315, 1.442695
    %v319 = vpow.pop %v318
    %v320 = vadd.f32 %v317, 1.0
    %v321 = vadd.f32 %v319, 1.0
    %v322 = vrcp.pop %v320
    %v323 = vmul.f32 1.0, %v322
    %v324 = vrcp.pop %v321
    %v325 = vmul.f32 1.0, %v324
    %328 = vrot.lane.b32.xlu0 %v306, 32
    %v329 = vpop.permute.xlu0 %328
    %330 = vrot.lane.b32.xlu0 %v311, 32
    %v331 = vpop.permute.xlu0 %330
    %v334 = vmul.f32 %v323, %v329
    %v335 = vmul.f32 %v325, %v331
    %338 = vrot.lane.b32.xlu0 %v334, 64
    %v339 = vpop.permute.xlu0 %338
    %340 = vrot.lane.b32.xlu0 %v335, 64
    %v341 = vpop.permute.xlu0 %340
    %v344 = vadd.f32 %v306, %v339
    %v345 = vadd.f32 %v311, %v341
    %v346 = vtanh.pop %v344
    %v347 = vtanh.pop %v345
    %v348 = vsub.f32 1.0, %v323
    %v349 = vsub.f32 1.0, %v325
    %352 = vrot.lane.b32.xlu0 %v346, 96
    %v353 = vpop.permute.xlu0 %352
    %354 = vrot.lane.b32.xlu0 %v347, 96
    %v355 = vpop.permute.xlu0 %354
    %v358 = vmul.f32 %v348, %v353
    %v359 = vmul.f32 %v349, %v355
    %v360 = vmul.f32 %v323, %v215
    %v361 = vmul.f32 %v325, %v217
    %v362 = vadd.f32 %v358, %v360
    %v363 = vadd.f32 %v359, %v361
    %v364 = vld [vmem:[#allocation2 + $0x20] sm:$0xff]
    %v365 = vld [vmem:[#allocation2 + $0x28] sm:$0xff]
    %v366 = vsub.f32 1.0, %v364
    %v367 = vsub.f32 1.0, %v365
    %v368 = vmul.f32 %v40, %v366
    %v369 = vmul.f32 %v41, %v367
    %372 = vrot.lane.b32.xlu0 %v362, 96
    %v373 = vpop.permute.xlu0 %372
    %374 = vrot.lane.b32.xlu0 %v363, 96
    %v375 = vpop.permute.xlu0 %374
    %v378 = vmul.f32 %v364, %v373
    %v379 = vmul.f32 %v365, %v375
    %v380 = vadd.f32 %v368, %v378
    %v381 = vadd.f32 %v369, %v379
    %v383 = vsel %vm50, %v380, 0
    %v386 = vsel %vm50, %v381, 0
    %388 = vmatprep.subr.mxu0 0.0
    %389 = vmatpush1.msra.mxu0 %v44
    %390 = vmatprep.subr.mxu0 0.0
    %391 = vmatpush1.msra.mxu0 %v45
    %392 = vmatprep.subr.mxu0 0.0
    %393 = vmatpush1.msra.mxu0 %v46
    %394 = vmatprep.subr.mxu0 0.0
    %395 = vmatpush1.msra.mxu0 %v47
    %396 = vmatprep.subr.mxu0 0.0
    %397 = vmatpush1.msra.mxu0 0.0
    %398 = vmatprep.subr.mxu0 0.0
    %399 = vmatpush1.msra.mxu0 0.0
    %400 = vmatprep.subr.mxu0 0.0
    %401 = vmatpush1.msra.mxu0 0.0
    %402 = vmatprep.subr.mxu0 0.0
    %403 = vmatpush1.msra.mxu0 0.0
    %404 = vmatprep.subr.mxu0 0.0
    %405 = vmatpush1.msra.mxu0 0.0
    %406 = vmatprep.subr.mxu0 0.0
    %407 = vmatpush1.msra.mxu0 0.0
    %408 = vmatprep.subr.mxu0 0.0
    %409 = vmatpush1.msra.mxu0 0.0
    %410 = vmatprep.subr.mxu0 0.0
    %411 = vmatpush1.msra.mxu0 0.0
    %412 = vmatprep.subr.mxu0 0.0
    %413 = vmatpush1.msra.mxu0 0.0
    %414 = vmatprep.subr.mxu0 0.0
    %415 = vmatpush1.msra.mxu0 0.0
    %416 = vmatprep.subr.mxu0 0.0
    %417 = vmatpush1.msra.mxu0 0.0
    %418 = vmatprep.subr.mxu0 0.0
    %419 = vmatpush1.msra.mxu0 0.0
    %420 = vmatprep.subr.mxu0 0.0
    %421 = vmatpush1.msra.mxu0 0.0
    %422 = vmatprep.subr.mxu0 0.0
    %423 = vmatpush1.msra.mxu0 0.0
    %424 = vmatprep.subr.mxu0 0.0
    %425 = vmatpush1.msra.mxu0 0.0
    %426 = vmatprep.subr.mxu0 0.0
    %427 = vmatpush1.msra.mxu0 0.0
    %428 = vmatprep.subr.mxu0 0.0
    %429 = vmatpush1.msra.mxu0 0.0
    %430 = vmatprep.subr.mxu0 0.0
    %431 = vmatpush1.msra.mxu0 0.0
    %432 = vmatprep.subr.mxu0 0.0
    %433 = vmatpush1.msra.mxu0 0.0
    %434 = vmatprep.subr.mxu0 0.0
    %435 = vmatpush1.msra.mxu0 0.0
    %436 = vmatprep.subr.mxu0 0.0
    %437 = vmatpush1.msra.mxu0 0.0
    %438 = vmatprep.subr.mxu0 0.0
    %439 = vmatpush1.msra.mxu0 0.0
    %440 = vmatprep.subr.mxu0 0.0
    %441 = vmatpush1.msra.mxu0 0.0
    %442 = vmatprep.subr.mxu0 0.0
    %443 = vmatpush1.msra.mxu0 0.0
    %444 = vmatprep.subr.mxu0 0.0
    %445 = vmatpush1.msra.mxu0 0.0
    %446 = vmatprep.subr.mxu0 0.0
    %447 = vmatpush1.msra.mxu0 0.0
    %448 = vmatprep.subr.mxu0 0.0
    %449 = vmatpush1.msra.mxu0 0.0
    %450 = vmatprep.subr.mxu0 0.0
    %451 = vmatpush1.msra.mxu0 0.0
    %452 = vmatprep.mubr.f32.mxu0 0.0
    %453 = vmatmul.mubr.f32.gmra.mrb[0].mxu0 %v383
    %v454 = vpop.f32.mrb[0].mxu0
    %v455 = vadd.f32 %v48, %v454
    %v456 = vpop.f32.mrb[0].mxu0
    %457 = vmatprep.mubr.f32.mxu0 0.0
    %458 = vmatmul.mubr.f32.gmra.mrb[0].mxu0 %v386
    %v459 = vpop.f32.mrb[0].mxu0
    %v460 = vadd.f32 %v49, %v459
    %v461 = vpop.f32.mrb[0].mxu0
    %462 = vdwg.mxu0
    %463 = vmatprep.subr.mxu0 0.0
    %464 = vmatpush1.msra.mxu0 %v455
    %465 = vmatprep.subr.mxu0 0.0
    %466 = vmatpush1.msra.mxu0 %v460
    %467 = vmatprep.subr.mxu0 0.0
    %468 = vmatpush1.msra.mxu0 0.0
    %469 = vmatprep.subr.mxu0 0.0
    %470 = vmatpush1.msra.mxu0 0.0
    %471 = vmatprep.subr.mxu0 0.0
    %472 = vmatpush1.msra.mxu0 0.0
    %473 = vmatprep.subr.mxu0 0.0
    %474 = vmatpush1.msra.mxu0 0.0
    %475 = vmatprep.subr.mxu0 0.0
    %476 = vmatpush1.msra.mxu0 0.0
    %477 = vmatprep.subr.mxu0 0.0
    %478 = vmatpush1.msra.mxu0 0.0
    %479 = vmatprep.subr.mxu0 0.0
    %480 = vmatpush1.msra.mxu0 0.0
    %481 = vmatprep.subr.mxu0 0.0
    %482 = vmatpush1.msra.mxu0 0.0
    %483 = vmatprep.subr.mxu0 0.0
    %484 = vmatpush1.msra.mxu0 0.0
    %485 = vmatprep.subr.mxu0 0.0
    %486 = vmatpush1.msra.mxu0 0.0
    %487 = vmatprep.subr.mxu0 0.0
    %488 = vmatpush1.msra.mxu0 0.0
    %489 = vmatprep.subr.mxu0 0.0
    %490 = vmatpush1.msra.mxu0 0.0
    %491 = vmatprep.subr.mxu0 0.0
    %492 = vmatpush1.msra.mxu0 0.0
    %493 = vmatprep.subr.mxu0 0.0
    %494 = vmatpush1.msra.mxu0 0.0
    %495 = vmatprep.subr.mxu0 0.0
    %496 = vmatpush1.msra.mxu0 0.0
    %497 = vmatprep.subr.mxu0 0.0
    %498 = vmatpush1.msra.mxu0 0.0
    %499 = vmatprep.subr.mxu0 0.0
    %500 = vmatpush1.msra.mxu0 0.0
    %501 = vmatprep.subr.mxu0 0.0
    %502 = vmatpush1.msra.mxu0 0.0
    %503 = vmatprep.subr.mxu0 0.0
    %504 = vmatpush1.msra.mxu0 0.0
    %505 = vmatprep.subr.mxu0 0.0
    %506 = vmatpush1.msra.mxu0 0.0
    %507 = vmatprep.subr.mxu0 0.0
    %508 = vmatpush1.msra.mxu0 0.0
    %509 = vmatprep.subr.mxu0 0.0
    %510 = vmatpush1.msra.mxu0 0.0
    %511 = vmatprep.subr.mxu0 0.0
    %512 = vmatpush1.msra.mxu0 0.0
    %513 = vmatprep.subr.mxu0 0.0
    %514 = vmatpush1.msra.mxu0 0.0
    %515 = vmatprep.subr.mxu0 0.0
    %516 = vmatpush1.msra.mxu0 0.0
    %517 = vmatprep.subr.mxu0 0.0
    %518 = vmatpush1.msra.mxu0 0.0
    %519 = vmatprep.subr.mxu0 0.0
    %520 = vmatpush1.msra.mxu0 0.0
    %521 = vmatprep.subr.mxu0 0.0
    %522 = vmatpush1.msra.mxu0 0.0
    %523 = vmatprep.subr.mxu0 0.0
    %524 = vmatpush1.msra.mxu0 0.0
    %525 = vmatprep.subr.mxu0 0.0
    %526 = vmatpush1.msra.mxu0 0.0
    %527 = vmatprep.mubr.f32.mxu0 0.0
    %528 = vmatmul.mubr.f32.gmra.mrb[0].mxu0 %v134
    %v529 = vpop.f32.mrb[0].mxu0
    %v530 = vadd.f32 0.0, %v529
    %v531 = vpop.f32.mrb[0].mxu0
    %532 = vmatprep.mubr.f32.mxu0 0.0
    %533 = vmatmul.mubr.f32.gmra.mrb[0].mxu0 %v137
    %v534 = vpop.f32.mrb[0].mxu0
    %v535 = vadd.f32 0.0, %v534
    %v536 = vpop.f32.mrb[0].mxu0
    %537 = vdwg.mxu0
    %538 = vrot.lane.b32.xlu0 %v380, 32
    %v539 = vpop.permute.xlu0 %538
    %540 = vrot.lane.b32.xlu0 %v381, 32
    %v541 = vpop.permute.xlu0 %540
    %v544 = vsel %vm50, %v530, %v539
    %v545 = vsel %vm50, %v535, %v541
    %v547 = vsel %vm232, %v544, 0
    %v550 = vsel %vm232, %v545, 0
    %552 = vmatprep.subr.mxu0 0.0
    %553 = vmatpush1.msra.mxu0 %v222
    %554 = vmatprep.subr.mxu0 0.0
    %555 = vmatpush1.msra.mxu0 %v223
    %556 = vmatprep.subr.mxu0 0.0
    %557 = vmatpush1.msra.mxu0 %v224
    %558 = vmatprep.subr.mxu0 0.0
    %559 = vmatpush1.msra.mxu0 %v225
    %560 = vmatprep.subr.mxu0 0.0
    %561 = vmatpush1.msra.mxu0 %v226
    %562 = vmatprep.subr.mxu0 0.0
    %563 = vmatpush1.msra.mxu0 %v227
    %564 = vmatprep.subr.mxu0 0.0
    %565 = vmatpush1.msra.mxu0 %v228
    %566 = vmatprep.subr.mxu0 0.0
    %567 = vmatpush1.msra.mxu0 %v229
    %568 = vmatprep.subr.mxu0 0.0
    %569 = vmatpush1.msra.mxu0 0.0
    %570 = vmatprep.subr.mxu0 0.0
    %571 = vmatpush1.msra.mxu0 0.0
    %572 = vmatprep.subr.mxu0 0.0
    %573 = vmatpush1.msra.mxu0 0.0
    %574 = vmatprep.subr.mxu0 0.0
    %575 = vmatpush1.msra.mxu0 0.0
    %576 = vmatprep.subr.mxu0 0.0
    %577 = vmatpush1.msra.mxu0 0.0
    %578 = vmatprep.subr.mxu0 0.0
    %579 = vmatpush1.msra.mxu0 0.0
    %580 = vmatprep.subr.mxu0 0.0
    %581 = vmatpush1.msra.mxu0 0.0
    %582 = vmatprep.subr.mxu0 0.0
    %583 = vmatpush1.msra.mxu0 0.0
    %584 = vmatprep.subr.mxu0 0.0
    %585 = vmatpush1.msra.mxu0 0.0
    %586 = vmatprep.subr.mxu0 0.0
    %587 = vmatpush1.msra.mxu0 0.0
    %588 = vmatprep.subr.mxu0 0.0
    %589 = vmatpush1.msra.mxu0 0.0
    %590 = vmatprep.subr.mxu0 0.0
    %591 = vmatpush1.msra.mxu0 0.0
    %592 = vmatprep.subr.mxu0 0.0
    %593 = vmatpush1.msra.mxu0 0.0
    %594 = vmatprep.subr.mxu0 0.0
    %595 = vmatpush1.msra.mxu0 0.0
    %596 = vmatprep.subr.mxu0 0.0
    %597 = vmatpush1.msra.mxu0 0.0
    %598 = vmatprep.subr.mxu0 0.0
    %599 = vmatpush1.msra.mxu0 0.0
    %600 = vmatprep.subr.mxu0 0.0
    %601 = vmatpush1.msra.mxu0 0.0
    %602 = vmatprep.subr.mxu0 0.0
    %603 = vmatpush1.msra.mxu0 0.0
    %604 = vmatprep.subr.mxu0 0.0
    %605 = vmatpush1.msra.mxu0 0.0
    %606 = vmatprep.subr.mxu0 0.0
    %607 = vmatpush1.msra.mxu0 0.0
    %608 = vmatprep.subr.mxu0 0.0
    %609 = vmatpush1.msra.mxu0 0.0
    %610 = vmatprep.subr.mxu0 0.0
    %611 = vmatpush1.msra.mxu0 0.0
    %612 = vmatprep.subr.mxu0 0.0
    %613 = vmatpush1.msra.mxu0 0.0
    %614 = vmatprep.subr.mxu0 0.0
    %615 = vmatpush1.msra.mxu0 0.0
    %616 = vmatprep.mubr.f32.mxu0 0.0
    %617 = vmatmul.mubr.f32.gmra.mrb[0].mxu0 %v547
    %v618 = vpop.f32.mrb[0].mxu0
    %v619 = vadd.f32 %v230, %v618
    %v620 = vpop.f32.mrb[0].mxu0
    %621 = vmatprep.mubr.f32.mxu0 0.0
    %622 = vmatmul.mubr.f32.gmra.mrb[0].mxu0 %v550
    %v623 = vpop.f32.mrb[0].mxu0
    %v624 = vadd.f32 %v231, %v623
    %v625 = vpop.f32.mrb[0].mxu0
    %626 = vdwg.mxu0
    %v627 = vxor.u32 %v619, 2147483648
    %v628 = vxor.u32 %v624, 2147483648
    %v629 = vmul.f32 %v627, 1.442695
    %v630 = vpow.pop %v629
    %v631 = vmul.f32 %v628, 1.442695
    %v632 = vpow.pop %v631
    %v633 = vadd.f32 %v630, 1.0
    %v634 = vadd.f32 %v632, 1.0
    %v635 = vrcp.pop %v633
    %v636 = vmul.f32 1.0, %v635
    %v637 = vrcp.pop %v634
    %v638 = vmul.f32 1.0, %v637
    %641 = vrot.lane.b32.xlu0 %v619, 32
    %v642 = vpop.permute.xlu0 %641
    %643 = vrot.lane.b32.xlu0 %v624, 32
    %v644 = vpop.permute.xlu0 %643
    %v647 = vmul.f32 %v636, %v642
    %v648 = vmul.f32 %v638, %v644
    %651 = vrot.lane.b32.xlu0 %v647, 64
    %v652 = vpop.permute.xlu0 %651
    %653 = vrot.lane.b32.xlu0 %v648, 64
    %v654 = vpop.permute.xlu0 %653
    %v657 = vadd.f32 %v619, %v652
    %v658 = vadd.f32 %v624, %v654
    %v659 = vtanh.pop %v657
    %v660 = vtanh.pop %v658
    %v661 = vsub.f32 1.0, %v636
    %v662 = vsub.f32 1.0, %v638
    %665 = vrot.lane.b32.xlu0 %v659, 96
    %v666 = vpop.permute.xlu0 %665
    %667 = vrot.lane.b32.xlu0 %v660, 96
    %v668 = vpop.permute.xlu0 %667
    %v671 = vmul.f32 %v661, %v666
    %v672 = vmul.f32 %v662, %v668
    %v673 = vmul.f32 %v636, %v539
    %v674 = vmul.f32 %v638, %v541
    %v675 = vadd.f32 %v671, %v673
    %v676 = vadd.f32 %v672, %v674
    %v677 = vld [vmem:[#allocation2 + $0x30] sm:$0xff]
    %v678 = vld [vmem:[#allocation2 + $0x38] sm:$0xff]
    %v679 = vsub.f32 1.0, %v677
    %v680 = vsub.f32 1.0, %v678
    %v681 = vmul.f32 %v380, %v679
    %v682 = vmul.f32 %v381, %v680
    %685 = vrot.lane.b32.xlu0 %v675, 96
    %v686 = vpop.permute.xlu0 %685
    %687 = vrot.lane.b32.xlu0 %v676, 96
    %v688 = vpop.permute.xlu0 %687
    %v691 = vmul.f32 %v677, %v686
    %v692 = vmul.f32 %v678, %v688
    %v693 = vadd.f32 %v681, %v691
    %v694 = vadd.f32 %v682, %v692
    %v696 = vsel %vm50, %v693, 0
    %v699 = vsel %vm50, %v694, 0
    %701 = vmatprep.subr.mxu0 0.0
    %702 = vmatpush1.msra.mxu0 %v44
    %703 = vmatprep.subr.mxu0 0.0
    %704 = vmatpush1.msra.mxu0 %v45
    %705 = vmatprep.subr.mxu0 0.0
    %706 = vmatpush1.msra.mxu0 %v46
    %707 = vmatprep.subr.mxu0 0.0
    %708 = vmatpush1.msra.mxu0 %v47
    %709 = vmatprep.subr.mxu0 0.0
    %710 = vmatpush1.msra.mxu0 0.0
    %711 = vmatprep.subr.mxu0 0.0
    %712 = vmatpush1.msra.mxu0 0.0
    %713 = vmatprep.subr.mxu0 0.0
    %714 = vmatpush1.msra.mxu0 0.0
    %715 = vmatprep.subr.mxu0 0.0
    %716 = vmatpush1.msra.mxu0 0.0
    %717 = vmatprep.subr.mxu0 0.0
    %718 = vmatpush1.msra.mxu0 0.0
    %719 = vmatprep.subr.mxu0 0.0
    %720 = vmatpush1.msra.mxu0 0.0
    %721 = vmatprep.subr.mxu0 0.0
    %722 = vmatpush1.msra.mxu0 0.0
    %723 = vmatprep.subr.mxu0 0.0
    %724 = vmatpush1.msra.mxu0 0.0
    %725 = vmatprep.subr.mxu0 0.0
    %726 = vmatpush1.msra.mxu0 0.0
    %727 = vmatprep.subr.mxu0 0.0
    %728 = vmatpush1.msra.mxu0 0.0
    %729 = vmatprep.subr.mxu0 0.0
    %730 = vmatpush1.msra.mxu0 0.0
    %731 = vmatprep.subr.mxu0 0.0
    %732 = vmatpush1.msra.mxu0 0.0
    %733 = vmatprep.subr.mxu0 0.0
    %734 = vmatpush1.msra.mxu0 0.0
    %735 = vmatprep.subr.mxu0 0.0
    %736 = vmatpush1.msra.mxu0 0.0
    %737 = vmatprep.subr.mxu0 0.0
    %738 = vmatpush1.msra.mxu0 0.0
    %739 = vmatprep.subr.mxu0 0.0
    %740 = vmatpush1.msra.mxu0 0.0
    %741 = vmatprep.subr.mxu0 0.0
    %742 = vmatpush1.msra.mxu0 0.0
    %743 = vmatprep.subr.mxu0 0.0
    %744 = vmatpush1.msra.mxu0 0.0
    %745 = vmatprep.subr.mxu0 0.0
    %746 = vmatpush1.msra.mxu0 0.0
    %747 = vmatprep.subr.mxu0 0.0
    %748 = vmatpush1.msra.mxu0 0.0
    %749 = vmatprep.subr.mxu0 0.0
    %750 = vmatpush1.msra.mxu0 0.0
    %751 = vmatprep.subr.mxu0 0.0
    %752 = vmatpush1.msra.mxu0 0.0
    %753 = vmatprep.subr.mxu0 0.0
    %754 = vmatpush1.msra.mxu0 0.0
    %755 = vmatprep.subr.mxu0 0.0
    %756 = vmatpush1.msra.mxu0 0.0
    %757 = vmatprep.subr.mxu0 0.0
    %758 = vmatpush1.msra.mxu0 0.0
    %759 = vmatprep.subr.mxu0 0.0
    %760 = vmatpush1.msra.mxu0 0.0
    %761 = vmatprep.subr.mxu0 0.0
    %762 = vmatpush1.msra.mxu0 0.0
    %763 = vmatprep.subr.mxu0 0.0
    %764 = vmatpush1.msra.mxu0 0.0
    %765 = vmatprep.mubr.f32.mxu0 0.0
    %766 = vmatmul.mubr.f32.gmra.mrb[0].mxu0 %v696
    %v767 = vpop.f32.mrb[0].mxu0
    %v768 = vadd.f32 %v48, %v767
    %v769 = vpop.f32.mrb[0].mxu0
    %770 = vmatprep.mubr.f32.mxu0 0.0
    %771 = vmatmul.mubr.f32.gmra.mrb[0].mxu0 %v699
    %v772 = vpop.f32.mrb[0].mxu0
    %v773 = vadd.f32 %v49, %v772
    %v774 = vpop.f32.mrb[0].mxu0
    %775 = vdwg.mxu0
    %776 = vmatprep.subr.mxu0 0.0
    %777 = vmatpush1.msra.mxu0 %v768
    %778 = vmatprep.subr.mxu0 0.0
    %779 = vmatpush1.msra.mxu0 %v773
    %780 = vmatprep.subr.mxu0 0.0
    %781 = vmatpush1.msra.mxu0 0.0
    %782 = vmatprep.subr.mxu0 0.0
    %783 = vmatpush1.msra.mxu0 0.0
    %784 = vmatprep.subr.mxu0 0.0
    %785 = vmatpush1.msra.mxu0 0.0
    %786 = vmatprep.subr.mxu0 0.0
    %787 = vmatpush1.msra.mxu0 0.0
    %788 = vmatprep.subr.mxu0 0.0
    %789 = vmatpush1.msra.mxu0 0.0
    %790 = vmatprep.subr.mxu0 0.0
    %791 = vmatpush1.msra.mxu0 0.0
    %792 = vmatprep.subr.mxu0 0.0
    %793 = vmatpush1.msra.mxu0 0.0
    %794 = vmatprep.subr.mxu0 0.0
    %795 = vmatpush1.msra.mxu0 0.0
    %796 = vmatprep.subr.mxu0 0.0
    %797 = vmatpush1.msra.mxu0 0.0
    %798 = vmatprep.subr.mxu0 0.0
    %799 = vmatpush1.msra.mxu0 0.0
    %800 = vmatprep.subr.mxu0 0.0
    %801 = vmatpush1.msra.mxu0 0.0
    %802 = vmatprep.subr.mxu0 0.0
    %803 = vmatpush1.msra.mxu0 0.0
    %804 = vmatprep.subr.mxu0 0.0
    %805 = vmatpush1.msra.mxu0 0.0
    %806 = vmatprep.subr.mxu0 0.0
    %807 = vmatpush1.msra.mxu0 0.0
    %808 = vmatprep.subr.mxu0 0.0
    %809 = vmatpush1.msra.mxu0 0.0
    %810 = vmatprep.subr.mxu0 0.0
    %811 = vmatpush1.msra.mxu0 0.0
    %812 = vmatprep.subr.mxu0 0.0
    %813 = vmatpush1.msra.mxu0 0.0
    %814 = vmatprep.subr.mxu0 0.0
    %815 = vmatpush1.msra.mxu0 0.0
    %816 = vmatprep.subr.mxu0 0.0
    %817 = vmatpush1.msra.mxu0 0.0
    %818 = vmatprep.subr.mxu0 0.0
    %819 = vmatpush1.msra.mxu0 0.0
    %820 = vmatprep.subr.mxu0 0.0
    %821 = vmatpush1.msra.mxu0 0.0
    %822 = vmatprep.subr.mxu0 0.0
    %823 = vmatpush1.msra.mxu0 0.0
    %824 = vmatprep.subr.mxu0 0.0
    %825 = vmatpush1.msra.mxu0 0.0
    %826 = vmatprep.subr.mxu0 0.0
    %827 = vmatpush1.msra.mxu0 0.0
    %828 = vmatprep.subr.mxu0 0.0
    %829 = vmatpush1.msra.mxu0 0.0
    %830 = vmatprep.subr.mxu0 0.0
    %831 = vmatpush1.msra.mxu0 0.0
    %832 = vmatprep.subr.mxu0 0.0
    %833 = vmatpush1.msra.mxu0 0.0
    %834 = vmatprep.subr.mxu0 0.0
    %835 = vmatpush1.msra.mxu0 0.0
    %836 = vmatprep.subr.mxu0 0.0
    %837 = vmatpush1.msra.mxu0 0.0
    %838 = vmatprep.subr.mxu0 0.0
    %839 = vmatpush1.msra.mxu0 0.0
    %840 = vmatprep.mubr.f32.mxu0 0.0
    %841 = vmatmul.mubr.f32.gmra.mrb[0].mxu0 %v134
    %v842 = vpop.f32.mrb[0].mxu0
    %v843 = vadd.f32 0.0, %v842
    %v844 = vpop.f32.mrb[0].mxu0
    %845 = vmatprep.mubr.f32.mxu0 0.0
    %846 = vmatmul.mubr.f32.gmra.mrb[0].mxu0 %v137
    %v847 = vpop.f32.mrb[0].mxu0
    %v848 = vadd.f32 0.0, %v847
    %v849 = vpop.f32.mrb[0].mxu0
    %850 = vdwg.mxu0
    %851 = vrot.lane.b32.xlu0 %v693, 32
    %v852 = vpop.permute.xlu0 %851
    %853 = vrot.lane.b32.xlu0 %v694, 32
    %v854 = vpop.permute.xlu0 %853
    %v857 = vsel %vm50, %v843, %v852
    %v858 = vsel %vm50, %v848, %v854
    %v860 = vsel %vm232, %v857, 0
    %v863 = vsel %vm232, %v858, 0
    %865 = vmatprep.subr.mxu0 0.0
    %866 = vmatpush1.msra.mxu0 %v222
    %867 = vmatprep.subr.mxu0 0.0
    %868 = vmatpush1.msra.mxu0 %v223
    %869 = vmatprep.subr.mxu0 0.0
    %870 = vmatpush1.msra.mxu0 %v224
    %871 = vmatprep.subr.mxu0 0.0
    %872 = vmatpush1.msra.mxu0 %v225
    %873 = vmatprep.subr.mxu0 0.0
    %874 = vmatpush1.msra.mxu0 %v226
    %875 = vmatprep.subr.mxu0 0.0
    %876 = vmatpush1.msra.mxu0 %v227
    %877 = vmatprep.subr.mxu0 0.0
    %878 = vmatpush1.msra.mxu0 %v228
    %879 = vmatprep.subr.mxu0 0.0
    %880 = vmatpush1.msra.mxu0 %v229
    %881 = vmatprep.subr.mxu0 0.0
    %882 = vmatpush1.msra.mxu0 0.0
    %883 = vmatprep.subr.mxu0 0.0
    %884 = vmatpush1.msra.mxu0 0.0
    %885 = vmatprep.subr.mxu0 0.0
    %886 = vmatpush1.msra.mxu0 0.0
    %887 = vmatprep.subr.mxu0 0.0
    %888 = vmatpush1.msra.mxu0 0.0
    %889 = vmatprep.subr.mxu0 0.0
    %890 = vmatpush1.msra.mxu0 0.0
    %891 = vmatprep.subr.mxu0 0.0
    %892 = vmatpush1.msra.mxu0 0.0
    %893 = vmatprep.subr.mxu0 0.0
    %894 = vmatpush1.msra.mxu0 0.0
    %895 = vmatprep.subr.mxu0 0.0
    %896 = vmatpush1.msra.mxu0 0.0
    %897 = vmatprep.subr.mxu0 0.0
    %898 = vmatpush1.msra.mxu0 0.0
    %899 = vmatprep.subr.mxu0 0.0
    %900 = vmatpush1.msra.mxu0 0.0
    %901 = vmatprep.subr.mxu0 0.0
    %902 = vmatpush1.msra.mxu0 0.0
    %903 = vmatprep.subr.mxu0 0.0
    %904 = vmatpush1.msra.mxu0 0.0
    %905 = vmatprep.subr.mxu0 0.0
    %906 = vmatpush1.msra.mxu0 0.0
    %907 = vmatprep.subr.mxu0 0.0
    %908 = vmatpush1.msra.mxu0 0.0
    %909 = vmatprep.subr.mxu0 0.0
    %910 = vmatpush1.msra.mxu0 0.0
    %911 = vmatprep.subr.mxu0 0.0
    %912 = vmatpush1.msra.mxu0 0.0
    %913 = vmatprep.subr.mxu0 0.0
    %914 = vmatpush1.msra.mxu0 0.0
    %915 = vmatprep.subr.mxu0 0.0
    %916 = vmatpush1.msra.mxu0 0.0
    %917 = vmatprep.subr.mxu0 0.0
    %918 = vmatpush1.msra.mxu0 0.0
    %919 = vmatprep.subr.mxu0 0.0
    %920 = vmatpush1.msra.mxu0 0.0
    %921 = vmatprep.subr.mxu0 0.0
    %922 = vmatpush1.msra.mxu0 0.0
    %923 = vmatprep.subr.mxu0 0.0
    %924 = vmatpush1.msra.mxu0 0.0
    %925 = vmatprep.subr.mxu0 0.0
    %926 = vmatpush1.msra.mxu0 0.0
    %927 = vmatprep.subr.mxu0 0.0
    %928 = vmatpush1.msra.mxu0 0.0
    %929 = vmatprep.mubr.f32.mxu0 0.0
    %930 = vmatmul.mubr.f32.gmra.mrb[0].mxu0 %v860
    %v931 = vpop.f32.mrb[0].mxu0
    %v932 = vadd.f32 %v230, %v931
    %v933 = vpop.f32.mrb[0].mxu0
    %934 = vmatprep.mubr.f32.mxu0 0.0
    %935 = vmatmul.mubr.f32.gmra.mrb[0].mxu0 %v863
    %v936 = vpop.f32.mrb[0].mxu0
    %v937 = vadd.f32 %v231, %v936
    %v938 = vpop.f32.mrb[0].mxu0
    %939 = vdwg.mxu0
    %v940 = vxor.u32 %v932, 2147483648
    %v941 = vxor.u32 %v937, 2147483648
    %v942 = vmul.f32 %v940, 1.442695
    %v943 = vpow.pop %v942
    %v944 = vmul.f32 %v941, 1.442695
    %v945 = vpow.pop %v944
    %v946 = vadd.f32 %v943, 1.0
    %v947 = vadd.f32 %v945, 1.0
    %v948 = vrcp.pop %v946
    %v949 = vmul.f32 1.0, %v948
    %v950 = vrcp.pop %v947
    %v951 = vmul.f32 1.0, %v950
    %954 = vrot.lane.b32.xlu0 %v932, 32
    %v955 = vpop.permute.xlu0 %954
    %956 = vrot.lane.b32.xlu0 %v937, 32
    %v957 = vpop.permute.xlu0 %956
    %v960 = vmul.f32 %v949, %v955
    %v961 = vmul.f32 %v951, %v957
    %964 = vrot.lane.b32.xlu0 %v960, 64
    %v965 = vpop.permute.xlu0 %964
    %966 = vrot.lane.b32.xlu0 %v961, 64
    %v967 = vpop.permute.xlu0 %966
    %v970 = vadd.f32 %v932, %v965
    %v971 = vadd.f32 %v937, %v967
    %v972 = vtanh.pop %v970
    %v973 = vtanh.pop %v971
    %v974 = vsub.f32 1.0, %v949
    %v975 = vsub.f32 1.0, %v951
    %978 = vrot.lane.b32.xlu0 %v972, 96
    %v979 = vpop.permute.xlu0 %978
    %980 = vrot.lane.b32.xlu0 %v973, 96
    %v981 = vpop.permute.xlu0 %980
    %v984 = vmul.f32 %v974, %v979
    %v985 = vmul.f32 %v975, %v981
    %v986 = vmul.f32 %v949, %v852
    %v987 = vmul.f32 %v951, %v854
    %v988 = vadd.f32 %v984, %v986
    %v989 = vadd.f32 %v985, %v987
    %v990 = vld [vmem:[#allocation2 + $0x40] sm:$0xff]
    %v991 = vld [vmem:[#allocation2 + $0x48] sm:$0xff]
    %v992 = vsub.f32 1.0, %v990
    %v993 = vsub.f32 1.0, %v991
    %v994 = vmul.f32 %v693, %v992
    %v995 = vmul.f32 %v694, %v993
    %998 = vrot.lane.b32.xlu0 %v988, 96
    %v999 = vpop.permute.xlu0 %998
    %1000 = vrot.lane.b32.xlu0 %v989, 96
    %v1001 = vpop.permute.xlu0 %1000
    %v1004 = vmul.f32 %v990, %v999
    %v1005 = vmul.f32 %v991, %v1001
    %v1006 = vadd.f32 %v994, %v1004
    %v1007 = vadd.f32 %v995, %v1005
    %v1009 = vsel %vm50, %v1006, 0
    %v1012 = vsel %vm50, %v1007, 0
    %1014 = vmatprep.subr.mxu0 0.0
    %1015 = vmatpush1.msra.mxu0 %v44
    %1016 = vmatprep.subr.mxu0 0.0
    %1017 = vmatpush1.msra.mxu0 %v45
    %1018 = vmatprep.subr.mxu0 0.0
    %1019 = vmatpush1.msra.mxu0 %v46
    %1020 = vmatprep.subr.mxu0 0.0
    %1021 = vmatpush1.msra.mxu0 %v47
    %1022 = vmatprep.subr.mxu0 0.0
    %1023 = vmatpush1.msra.mxu0 0.0
    %1024 = vmatprep.subr.mxu0 0.0
    %1025 = vmatpush1.msra.mxu0 0.0
    %1026 = vmatprep.subr.mxu0 0.0
    %1027 = vmatpush1.msra.mxu0 0.0
    %1028 = vmatprep.subr.mxu0 0.0
    %1029 = vmatpush1.msra.mxu0 0.0
    %1030 = vmatprep.subr.mxu0 0.0
    %1031 = vmatpush1.msra.mxu0 0.0
    %1032 = vmatprep.subr.mxu0 0.0
    %1033 = vmatpush1.msra.mxu0 0.0
    %1034 = vmatprep.subr.mxu0 0.0
    %1035 = vmatpush1.msra.mxu0 0.0
    %1036 = vmatprep.subr.mxu0 0.0
    %1037 = vmatpush1.msra.mxu0 0.0
    %1038 = vmatprep.subr.mxu0 0.0
    %1039 = vmatpush1.msra.mxu0 0.0
    %1040 = vmatprep.subr.mxu0 0.0
    %1041 = vmatpush1.msra.mxu0 0.0
    %1042 = vmatprep.subr.mxu0 0.0
    %1043 = vmatpush1.msra.mxu0 0.0
    %1044 = vmatprep.subr.mxu0 0.0
    %1045 = vmatpush1.msra.mxu0 0.0
    %1046 = vmatprep.subr.mxu0 0.0
    %1047 = vmatpush1.msra.mxu0 0.0
    %1048 = vmatprep.subr.mxu0 0.0
    %1049 = vmatpush1.msra.mxu0 0.0
    %1050 = vmatprep.subr.mxu0 0.0
    %1051 = vmatpush1.msra.mxu0 0.0
    %1052 = vmatprep.subr.mxu0 0.0
    %1053 = vmatpush1.msra.mxu0 0.0
    %1054 = vmatprep.subr.mxu0 0.0
    %1055 = vmatpush1.msra.mxu0 0.0
    %1056 = vmatprep.subr.mxu0 0.0
    %1057 = vmatpush1.msra.mxu0 0.0
    %1058 = vmatprep.subr.mxu0 0.0
    %1059 = vmatpush1.msra.mxu0 0.0
    %1060 = vmatprep.subr.mxu0 0.0
    %1061 = vmatpush1.msra.mxu0 0.0
    %1062 = vmatprep.subr.mxu0 0.0
    %1063 = vmatpush1.msra.mxu0 0.0
    %1064 = vmatprep.subr.mxu0 0.0
    %1065 = vmatpush1.msra.mxu0 0.0
    %1066 = vmatprep.subr.mxu0 0.0
    %1067 = vmatpush1.msra.mxu0 0.0
    %1068 = vmatprep.subr.mxu0 0.0
    %1069 = vmatpush1.msra.mxu0 0.0
    %1070 = vmatprep.subr.mxu0 0.0
    %1071 = vmatpush1.msra.mxu0 0.0
    %1072 = vmatprep.subr.mxu0 0.0
    %1073 = vmatpush1.msra.mxu0 0.0
    %1074 = vmatprep.subr.mxu0 0.0
    %1075 = vmatpush1.msra.mxu0 0.0
    %1076 = vmatprep.subr.mxu0 0.0
    %1077 = vmatpush1.msra.mxu0 0.0
    %1078 = vmatprep.mubr.f32.mxu0 0.0
    %1079 = vmatmul.mubr.f32.gmra.mrb[0].mxu0 %v1009
    %v1080 = vpop.f32.mrb[0].mxu0
    %v1081 = vadd.f32 %v48, %v1080
    %v1082 = vpop.f32.mrb[0].mxu0
    %1083 = vmatprep.mubr.f32.mxu0 0.0
    %1084 = vmatmul.mubr.f32.gmra.mrb[0].mxu0 %v1012
    %v1085 = vpop.f32.mrb[0].mxu0
    %v1086 = vadd.f32 %v49, %v1085
    %v1087 = vpop.f32.mrb[0].mxu0
    %1088 = vdwg.mxu0
    %1089 = vmatprep.subr.mxu0 0.0
    %1090 = vmatpush1.msra.mxu0 %v1081
    %1091 = vmatprep.subr.mxu0 0.0
    %1092 = vmatpush1.msra.mxu0 %v1086
    %1093 = vmatprep.subr.mxu0 0.0
    %1094 = vmatpush1.msra.mxu0 0.0
    %1095 = vmatprep.subr.mxu0 0.0
    %1096 = vmatpush1.msra.mxu0 0.0
    %1097 = vmatprep.subr.mxu0 0.0
    %1098 = vmatpush1.msra.mxu0 0.0
    %1099 = vmatprep.subr.mxu0 0.0
    %1100 = vmatpush1.msra.mxu0 0.0
    %1101 = vmatprep.subr.mxu0 0.0
    %1102 = vmatpush1.msra.mxu0 0.0
    %1103 = vmatprep.subr.mxu0 0.0
    %1104 = vmatpush1.msra.mxu0 0.0
    %1105 = vmatprep.subr.mxu0 0.0
    %1106 = vmatpush1.msra.mxu0 0.0
    %1107 = vmatprep.subr.mxu0 0.0
    %1108 = vmatpush1.msra.mxu0 0.0
    %1109 = vmatprep.subr.mxu0 0.0
    %1110 = vmatpush1.msra.mxu0 0.0
    %1111 = vmatprep.subr.mxu0 0.0
    %1112 = vmatpush1.msra.mxu0 0.0
    %1113 = vmatprep.subr.mxu0 0.0
    %1114 = vmatpush1.msra.mxu0 0.0
    %1115 = vmatprep.subr.mxu0 0.0
    %1116 = vmatpush1.msra.mxu0 0.0
    %1117 = vmatprep.subr.mxu0 0.0
    %1118 = vmatpush1.msra.mxu0 0.0
    %1119 = vmatprep.subr.mxu0 0.0
    %1120 = vmatpush1.msra.mxu0 0.0
    %1121 = vmatprep.subr.mxu0 0.0
    %1122 = vmatpush1.msra.mxu0 0.0
    %1123 = vmatprep.subr.mxu0 0.0
    %1124 = vmatpush1.msra.mxu0 0.0
    %1125 = vmatprep.subr.mxu0 0.0
    %1126 = vmatpush1.msra.mxu0 0.0
    %1127 = vmatprep.subr.mxu0 0.0
    %1128 = vmatpush1.msra.mxu0 0.0
    %1129 = vmatprep.subr.mxu0 0.0
    %1130 = vmatpush1.msra.mxu0 0.0
    %1131 = vmatprep.subr.mxu0 0.0
    %1132 = vmatpush1.msra.mxu0 0.0
    %1133 = vmatprep.subr.mxu0 0.0
    %1134 = vmatpush1.msra.mxu0 0.0
    %1135 = vmatprep.subr.mxu0 0.0
    %1136 = vmatpush1.msra.mxu0 0.0
    %1137 = vmatprep.subr.mxu0 0.0
    %1138 = vmatpush1.msra.mxu0 0.0
    %1139 = vmatprep.subr.mxu0 0.0
    %1140 = vmatpush1.msra.mxu0 0.0
    %1141 = vmatprep.subr.mxu0 0.0
    %1142 = vmatpush1.msra.mxu0 0.0
    %1143 = vmatprep.subr.mxu0 0.0
    %1144 = vmatpush1.msra.mxu0 0.0
    %1145 = vmatprep.subr.mxu0 0.0
    %1146 = vmatpush1.msra.mxu0 0.0
    %1147 = vmatprep.subr.mxu0 0.0
    %1148 = vmatpush1.msra.mxu0 0.0
    %1149 = vmatprep.subr.mxu0 0.0
    %1150 = vmatpush1.msra.mxu0 0.0
    %1151 = vmatprep.subr.mxu0 0.0
    %1152 = vmatpush1.msra.mxu0 0.0
    %1153 = vmatprep.mubr.f32.mxu0 0.0
    %1154 = vmatmul.mubr.f32.gmra.mrb[0].mxu0 %v134
    %v1155 = vpop.f32.mrb[0].mxu0
    %v1156 = vadd.f32 0.0, %v1155
    %v1157 = vpop.f32.mrb[0].mxu0
    %1158 = vmatprep.mubr.f32.mxu0 0.0
    %1159 = vmatmul.mubr.f32.gmra.mrb[0].mxu0 %v137
    %v1160 = vpop.f32.mrb[0].mxu0
    %v1161 = vadd.f32 0.0, %v1160
    %v1162 = vpop.f32.mrb[0].mxu0
    %1163 = vdwg.mxu0
    %1164 = vrot.lane.b32.xlu0 %v1006, 32
    %v1165 = vpop.permute.xlu0 %1164
    %1166 = vrot.lane.b32.xlu0 %v1007, 32
    %v1167 = vpop.permute.xlu0 %1166
    %v1170 = vsel %vm50, %v1156, %v1165
    %v1171 = vsel %vm50, %v1161, %v1167
    %v1173 = vsel %vm232, %v1170, 0
    %v1176 = vsel %vm232, %v1171, 0
    %1178 = vmatprep.subr.mxu0 0.0
    %1179 = vmatpush1.msra.mxu0 %v222
    %1180 = vmatprep.subr.mxu0 0.0
    %1181 = vmatpush1.msra.mxu0 %v223
    %1182 = vmatprep.subr.mxu0 0.0
    %1183 = vmatpush1.msra.mxu0 %v224
    %1184 = vmatprep.subr.mxu0 0.0
    %1185 = vmatpush1.msra.mxu0 %v225
    %1186 = vmatprep.subr.mxu0 0.0
    %1187 = vmatpush1.msra.mxu0 %v226
    %1188 = vmatprep.subr.mxu0 0.0
    %1189 = vmatpush1.msra.mxu0 %v227
    %1190 = vmatprep.subr.mxu0 0.0
    %1191 = vmatpush1.msra.mxu0 %v228
    %1192 = vmatprep.subr.mxu0 0.0
    %1193 = vmatpush1.msra.mxu0 %v229
    %1194 = vmatprep.subr.mxu0 0.0
    %1195 = vmatpush1.msra.mxu0 0.0
    %1196 = vmatprep.subr.mxu0 0.0
    %1197 = vmatpush1.msra.mxu0 0.0
    %1198 = vmatprep.subr.mxu0 0.0
    %1199 = vmatpush1.msra.mxu0 0.0
    %1200 = vmatprep.subr.mxu0 0.0
    %1201 = vmatpush1.msra.mxu0 0.0
    %1202 = vmatprep.subr.mxu0 0.0
    %1203 = vmatpush1.msra.mxu0 0.0
    %1204 = vmatprep.subr.mxu0 0.0
    %1205 = vmatpush1.msra.mxu0 0.0
    %1206 = vmatprep.subr.mxu0 0.0
    %1207 = vmatpush1.msra.mxu0 0.0
    %1208 = vmatprep.subr.mxu0 0.0
    %1209 = vmatpush1.msra.mxu0 0.0
    %1210 = vmatprep.subr.mxu0 0.0
    %1211 = vmatpush1.msra.mxu0 0.0
    %1212 = vmatprep.subr.mxu0 0.0
    %1213 = vmatpush1.msra.mxu0 0.0
    %1214 = vmatprep.subr.mxu0 0.0
    %1215 = vmatpush1.msra.mxu0 0.0
    %1216 = vmatprep.subr.mxu0 0.0
    %1217 = vmatpush1.msra.mxu0 0.0
    %1218 = vmatprep.subr.mxu0 0.0
    %1219 = vmatpush1.msra.mxu0 0.0
    %1220 = vmatprep.subr.mxu0 0.0
    %1221 = vmatpush1.msra.mxu0 0.0
    %1222 = vmatprep.subr.mxu0 0.0
    %1223 = vmatpush1.msra.mxu0 0.0
    %1224 = vmatprep.subr.mxu0 0.0
    %1225 = vmatpush1.msra.mxu0 0.0
    %1226 = vmatprep.subr.mxu0 0.0
    %1227 = vmatpush1.msra.mxu0 0.0
    %1228 = vmatprep.subr.mxu0 0.0
    %1229 = vmatpush1.msra.mxu0 0.0
    %1230 = vmatprep.subr.mxu0 0.0
    %1231 = vmatpush1.msra.mxu0 0.0
    %1232 = vmatprep.subr.mxu0 0.0
    %1233 = vmatpush1.msra.mxu0 0.0
    %1234 = vmatprep.subr.mxu0 0.0
    %1235 = vmatpush1.msra.mxu0 0.0
    %1236 = vmatprep.subr.mxu0 0.0
    %1237 = vmatpush1.msra.mxu0 0.0
    %1238 = vmatprep.subr.mxu0 0.0
    %1239 = vmatpush1.msra.mxu0 0.0
    %1240 = vmatprep.subr.mxu0 0.0
    %1241 = vmatpush1.msra.mxu0 0.0
    %1242 = vmatprep.mubr.f32.mxu0 0.0
    %1243 = vmatmul.mubr.f32.gmra.mrb[0].mxu0 %v1173
    %v1244 = vpop.f32.mrb[0].mxu0
    %v1245 = vadd.f32 %v230, %v1244
    %v1246 = vpop.f32.mrb[0].mxu0
    %1247 = vmatprep.mubr.f32.mxu0 0.0
    %1248 = vmatmul.mubr.f32.gmra.mrb[0].mxu0 %v1176
    %v1249 = vpop.f32.mrb[0].mxu0
    %v1250 = vadd.f32 %v231, %v1249
    %v1251 = vpop.f32.mrb[0].mxu0
    %1252 = vdwg.mxu0
    %v1253 = vxor.u32 %v1245, 2147483648
    %v1254 = vxor.u32 %v1250, 2147483648
    %v1255 = vmul.f32 %v1253, 1.442695
    %v1256 = vpow.pop %v1255
    %v1257 = vmul.f32 %v1254, 1.442695
    %v1258 = vpow.pop %v1257
    %v1259 = vadd.f32 %v1256, 1.0
    %v1260 = vadd.f32 %v1258, 1.0
    %v1261 = vrcp.pop %v1259
    %v1262 = vmul.f32 1.0, %v1261
    %v1263 = vrcp.pop %v1260
    %v1264 = vmul.f32 1.0, %v1263
    %1267 = vrot.lane.b32.xlu0 %v1245, 32
    %v1268 = vpop.permute.xlu0 %1267
    %1269 = vrot.lane.b32.xlu0 %v1250, 32
    %v1270 = vpop.permute.xlu0 %1269
    %v1273 = vmul.f32 %v1262, %v1268
    %v1274 = vmul.f32 %v1264, %v1270
    %1277 = vrot.lane.b32.xlu0 %v1273, 64
    %v1278 = vpop.permute.xlu0 %1277
    %1279 = vrot.lane.b32.xlu0 %v1274, 64
    %v1280 = vpop.permute.xlu0 %1279
    %v1283 = vadd.f32 %v1245, %v1278
    %v1284 = vadd.f32 %v1250, %v1280
    %v1285 = vtanh.pop %v1283
    %v1286 = vtanh.pop %v1284
    %v1287 = vsub.f32 1.0, %v1262
    %v1288 = vsub.f32 1.0, %v1264
    %1291 = vrot.lane.b32.xlu0 %v1285, 96
    %v1292 = vpop.permute.xlu0 %1291
    %1293 = vrot.lane.b32.xlu0 %v1286, 96
    %v1294 = vpop.permute.xlu0 %1293
    %v1297 = vmul.f32 %v1287, %v1292
    %v1298 = vmul.f32 %v1288, %v1294
    %v1299 = vmul.f32 %v1262, %v1165
    %v1300 = vmul.f32 %v1264, %v1167
    %v1301 = vadd.f32 %v1297, %v1299
    %v1302 = vadd.f32 %v1298, %v1300
    %v1303 = vmul.f32 %v1006, %v366
    %v1304 = vmul.f32 %v1007, %v367
    %1307 = vrot.lane.b32.xlu0 %v1301, 96
    %v1308 = vpop.permute.xlu0 %1307
    %1309 = vrot.lane.b32.xlu0 %v1302, 96
    %v1310 = vpop.permute.xlu0 %1309
    %v1313 = vmul.f32 %v364, %v1308
    %v1314 = vmul.f32 %v365, %v1310
    %v1315 = vadd.f32 %v1303, %v1313
    %v1316 = vadd.f32 %v1304, %v1314
    %v1318 = vsel %vm50, %v1315, 0
    %v1321 = vsel %vm50, %v1316, 0
    %1323 = vmatprep.subr.mxu0 0.0
    %1324 = vmatpush1.msra.mxu0 %v44
    %1325 = vmatprep.subr.mxu0 0.0
    %1326 = vmatpush1.msra.mxu0 %v45
    %1327 = vmatprep.subr.mxu0 0.0
    %1328 = vmatpush1.msra.mxu0 %v46
    %1329 = vmatprep.subr.mxu0 0.0
    %1330 = vmatpush1.msra.mxu0 %v47
    %1331 = vmatprep.subr.mxu0 0.0
    %1332 = vmatpush1.msra.mxu0 0.0
    %1333 = vmatprep.subr.mxu0 0.0
    %1334 = vmatpush1.msra.mxu0 0.0
    %1335 = vmatprep.subr.mxu0 0.0
    %1336 = vmatpush1.msra.mxu0 0.0
    %1337 = vmatprep.subr.mxu0 0.0
    %1338 = vmatpush1.msra.mxu0 0.0
    %1339 = vmatprep.subr.mxu0 0.0
    %1340 = vmatpush1.msra.mxu0 0.0
    %1341 = vmatprep.subr.mxu0 0.0
    %1342 = vmatpush1.msra.mxu0 0.0
    %1343 = vmatprep.subr.mxu0 0.0
    %1344 = vmatpush1.msra.mxu0 0.0
    %1345 = vmatprep.subr.mxu0 0.0
    %1346 = vmatpush1.msra.mxu0 0.0
    %1347 = vmatprep.subr.mxu0 0.0
    %1348 = vmatpush1.msra.mxu0 0.0
    %1349 = vmatprep.subr.mxu0 0.0
    %1350 = vmatpush1.msra.mxu0 0.0
    %1351 = vmatprep.subr.mxu0 0.0
    %1352 = vmatpush1.msra.mxu0 0.0
    %1353 = vmatprep.subr.mxu0 0.0
    %1354 = vmatpush1.msra.mxu0 0.0
    %1355 = vmatprep.subr.mxu0 0.0
    %1356 = vmatpush1.msra.mxu0 0.0
    %1357 = vmatprep.subr.mxu0 0.0
    %1358 = vmatpush1.msra.mxu0 0.0
    %1359 = vmatprep.subr.mxu0 0.0
    %1360 = vmatpush1.msra.mxu0 0.0
    %1361 = vmatprep.subr.mxu0 0.0
    %1362 = vmatpush1.msra.mxu0 0.0
    %1363 = vmatprep.subr.mxu0 0.0
    %1364 = vmatpush1.msra.mxu0 0.0
    %1365 = vmatprep.subr.mxu0 0.0
    %1366 = vmatpush1.msra.mxu0 0.0
    %1367 = vmatprep.subr.mxu0 0.0
    %1368 = vmatpush1.msra.mxu0 0.0
    %1369 = vmatprep.subr.mxu0 0.0
    %1370 = vmatpush1.msra.mxu0 0.0
    %1371 = vmatprep.subr.mxu0 0.0
    %1372 = vmatpush1.msra.mxu0 0.0
    %1373 = vmatprep.subr.mxu0 0.0
    %1374 = vmatpush1.msra.mxu0 0.0
    %1375 = vmatprep.subr.mxu0 0.0
    %1376 = vmatpush1.msra.mxu0 0.0
    %1377 = vmatprep.subr.mxu0 0.0
    %1378 = vmatpush1.msra.mxu0 0.0
    %1379 = vmatprep.subr.mxu0 0.0
    %1380 = vmatpush1.msra.mxu0 0.0
    %1381 = vmatprep.subr.mxu0 0.0
    %1382 = vmatpush1.msra.mxu0 0.0
    %1383 = vmatprep.subr.mxu0 0.0
    %1384 = vmatpush1.msra.mxu0 0.0
    %1385 = vmatprep.subr.mxu0 0.0
    %1386 = vmatpush1.msra.mxu0 0.0
    %1387 = vmatprep.mubr.f32.mxu0 0.0
    %1388 = vmatmul.mubr.f32.gmra.mrb[0].mxu0 %v1318
    %v1389 = vpop.f32.mrb[0].mxu0
    %v1390 = vadd.f32 %v48, %v1389
    %v1391 = vpop.f32.mrb[0].mxu0
    %1392 = vmatprep.mubr.f32.mxu0 0.0
    %1393 = vmatmul.mubr.f32.gmra.mrb[0].mxu0 %v1321
    %v1394 = vpop.f32.mrb[0].mxu0
    %v1395 = vadd.f32 %v49, %v1394
    %v1396 = vpop.f32.mrb[0].mxu0
    %1397 = vdwg.mxu0
    %1398 = vmatprep.subr.mxu0 0.0
    %1399 = vmatpush1.msra.mxu0 %v1390
    %1400 = vmatprep.subr.mxu0 0.0
    %1401 = vmatpush1.msra.mxu0 %v1395
    %1402 = vmatprep.subr.mxu0 0.0
    %1403 = vmatpush1.msra.mxu0 0.0
    %1404 = vmatprep.subr.mxu0 0.0
    %1405 = vmatpush1.msra.mxu0 0.0
    %1406 = vmatprep.subr.mxu0 0.0
    %1407 = vmatpush1.msra.mxu0 0.0
    %1408 = vmatprep.subr.mxu0 0.0
    %1409 = vmatpush1.msra.mxu0 0.0
    %1410 = vmatprep.subr.mxu0 0.0
    %1411 = vmatpush1.msra.mxu0 0.0
    %1412 = vmatprep.subr.mxu0 0.0
    %1413 = vmatpush1.msra.mxu0 0.0
    %1414 = vmatprep.subr.mxu0 0.0
    %1415 = vmatpush1.msra.mxu0 0.0
    %1416 = vmatprep.subr.mxu0 0.0
    %1417 = vmatpush1.msra.mxu0 0.0
    %1418 = vmatprep.subr.mxu0 0.0
    %1419 = vmatpush1.msra.mxu0 0.0
    %1420 = vmatprep.subr.mxu0 0.0
    %1421 = vmatpush1.msra.mxu0 0.0
    %1422 = vmatprep.subr.mxu0 0.0
    %1423 = vmatpush1.msra.mxu0 0.0
    %1424 = vmatprep.subr.mxu0 0.0
    %1425 = vmatpush1.msra.mxu0 0.0
    %1426 = vmatprep.subr.mxu0 0.0
    %1427 = vmatpush1.msra.mxu0 0.0
    %1428 = vmatprep.subr.mxu0 0.0
    %1429 = vmatpush1.msra.mxu0 0.0
    %1430 = vmatprep.subr.mxu0 0.0
    %1431 = vmatpush1.msra.mxu0 0.0
    %1432 = vmatprep.subr.mxu0 0.0
    %1433 = vmatpush1.msra.mxu0 0.0
    %1434 = vmatprep.subr.mxu0 0.0
    %1435 = vmatpush1.msra.mxu0 0.0
    %1436 = vmatprep.subr.mxu0 0.0
    %1437 = vmatpush1.msra.mxu0 0.0
    %1438 = vmatprep.subr.mxu0 0.0
    %1439 = vmatpush1.msra.mxu0 0.0
    %1440 = vmatprep.subr.mxu0 0.0
    %1441 = vmatpush1.msra.mxu0 0.0
    %1442 = vmatprep.subr.mxu0 0.0
    %1443 = vmatpush1.msra.mxu0 0.0
    %1444 = vmatprep.subr.mxu0 0.0
    %1445 = vmatpush1.msra.mxu0 0.0
    %1446 = vmatprep.subr.mxu0 0.0
    %1447 = vmatpush1.msra.mxu0 0.0
    %1448 = vmatprep.subr.mxu0 0.0
    %1449 = vmatpush1.msra.mxu0 0.0
    %1450 = vmatprep.subr.mxu0 0.0
    %1451 = vmatpush1.msra.mxu0 0.0
    %1452 = vmatprep.subr.mxu0 0.0
    %1453 = vmatpush1.msra.mxu0 0.0
    %1454 = vmatprep.subr.mxu0 0.0
    %1455 = vmatpush1.msra.mxu0 0.0
    %1456 = vmatprep.subr.mxu0 0.0
    %1457 = vmatpush1.msra.mxu0 0.0
    %1458 = vmatprep.subr.mxu0 0.0
    %1459 = vmatpush1.msra.mxu0 0.0
    %1460 = vmatprep.subr.mxu0 0.0
    %1461 = vmatpush1.msra.mxu0 0.0
    %1462 = vmatprep.mubr.f32.mxu0 0.0
    %1463 = vmatmul.mubr.f32.gmra.mrb[0].mxu0 %v134
    %v1464 = vpop.f32.mrb[0].mxu0
    %v1465 = vadd.f32 0.0, %v1464
    %v1466 = vpop.f32.mrb[0].mxu0
    %1467 = vmatprep.mubr.f32.mxu0 0.0
    %1468 = vmatmul.mubr.f32.gmra.mrb[0].mxu0 %v137
    %v1469 = vpop.f32.mrb[0].mxu0
    %v1470 = vadd.f32 0.0, %v1469
    %v1471 = vpop.f32.mrb[0].mxu0
    %1472 = vdwg.mxu0
    %1473 = vrot.lane.b32.xlu0 %v1315, 32
    %v1474 = vpop.permute.xlu0 %1473
    %1475 = vrot.lane.b32.xlu0 %v1316, 32
    %v1476 = vpop.permute.xlu0 %1475
    %v1479 = vsel %vm50, %v1465, %v1474
    %v1480 = vsel %vm50, %v1470, %v1476
    %v1482 = vsel %vm232, %v1479, 0
    %v1485 = vsel %vm232, %v1480, 0
    %1487 = vmatprep.subr.mxu0 0.0
    %1488 = vmatpush1.msra.mxu0 %v222
    %1489 = vmatprep.subr.mxu0 0.0
    %1490 = vmatpush1.msra.mxu0 %v223
    %1491 = vmatprep.subr.mxu0 0.0
    %1492 = vmatpush1.msra.mxu0 %v224
    %1493 = vmatprep.subr.mxu0 0.0
    %1494 = vmatpush1.msra.mxu0 %v225
    %1495 = vmatprep.subr.mxu0 0.0
    %1496 = vmatpush1.msra.mxu0 %v226
    %1497 = vmatprep.subr.mxu0 0.0
    %1498 = vmatpush1.msra.mxu0 %v227
    %1499 = vmatprep.subr.mxu0 0.0
    %1500 = vmatpush1.msra.mxu0 %v228
    %1501 = vmatprep.subr.mxu0 0.0
    %1502 = vmatpush1.msra.mxu0 %v229
    %1503 = vmatprep.subr.mxu0 0.0
    %1504 = vmatpush1.msra.mxu0 0.0
    %1505 = vmatprep.subr.mxu0 0.0
    %1506 = vmatpush1.msra.mxu0 0.0
    %1507 = vmatprep.subr.mxu0 0.0
    %1508 = vmatpush1.msra.mxu0 0.0
    %1509 = vmatprep.subr.mxu0 0.0
    %1510 = vmatpush1.msra.mxu0 0.0
    %1511 = vmatprep.subr.mxu0 0.0
    %1512 = vmatpush1.msra.mxu0 0.0
    %1513 = vmatprep.subr.mxu0 0.0
    %1514 = vmatpush1.msra.mxu0 0.0
    %1515 = vmatprep.subr.mxu0 0.0
    %1516 = vmatpush1.msra.mxu0 0.0
    %1517 = vmatprep.subr.mxu0 0.0
    %1518 = vmatpush1.msra.mxu0 0.0
    %1519 = vmatprep.subr.mxu0 0.0
    %1520 = vmatpush1.msra.mxu0 0.0
    %1521 = vmatprep.subr.mxu0 0.0
    %1522 = vmatpush1.msra.mxu0 0.0
    %1523 = vmatprep.subr.mxu0 0.0
    %1524 = vmatpush1.msra.mxu0 0.0
    %1525 = vmatprep.subr.mxu0 0.0
    %1526 = vmatpush1.msra.mxu0 0.0
    %1527 = vmatprep.subr.mxu0 0.0
    %1528 = vmatpush1.msra.mxu0 0.0
    %1529 = vmatprep.subr.mxu0 0.0
    %1530 = vmatpush1.msra.mxu0 0.0
    %1531 = vmatprep.subr.mxu0 0.0
    %1532 = vmatpush1.msra.mxu0 0.0
    %1533 = vmatprep.subr.mxu0 0.0
    %1534 = vmatpush1.msra.mxu0 0.0
    %1535 = vmatprep.subr.mxu0 0.0
    %1536 = vmatpush1.msra.mxu0 0.0
    %1537 = vmatprep.subr.mxu0 0.0
    %1538 = vmatpush1.msra.mxu0 0.0
    %1539 = vmatprep.subr.mxu0 0.0
    %1540 = vmatpush1.msra.mxu0 0.0
    %1541 = vmatprep.subr.mxu0 0.0
    %1542 = vmatpush1.msra.mxu0 0.0
    %1543 = vmatprep.subr.mxu0 0.0
    %1544 = vmatpush1.msra.mxu0 0.0
    %1545 = vmatprep.subr.mxu0 0.0
    %1546 = vmatpush1.msra.mxu0 0.0
    %1547 = vmatprep.subr.mxu0 0.0
    %1548 = vmatpush1.msra.mxu0 0.0
    %1549 = vmatprep.subr.mxu0 0.0
    %1550 = vmatpush1.msra.mxu0 0.0
    %1551 = vmatprep.mubr.f32.mxu0 0.0
    %1552 = vmatmul.mubr.f32.gmra.mrb[0].mxu0 %v1482
    %v1553 = vpop.f32.mrb[0].mxu0
    %v1554 = vadd.f32 %v230, %v1553
    %v1555 = vpop.f32.mrb[0].mxu0
    %1556 = vmatprep.mubr.f32.mxu0 0.0
    %1557 = vmatmul.mubr.f32.gmra.mrb[0].mxu0 %v1485
    %v1558 = vpop.f32.mrb[0].mxu0
    %v1559 = vadd.f32 %v231, %v1558
    %v1560 = vpop.f32.mrb[0].mxu0
    %1561 = vdwg.mxu0
    %v1562 = vxor.u32 %v1554, 2147483648
    %v1563 = vxor.u32 %v1559, 2147483648
    %v1564 = vmul.f32 %v1562, 1.442695
    %v1565 = vpow.pop %v1564
    %v1566 = vmul.f32 %v1563, 1.442695
    %v1567 = vpow.pop %v1566
    %v1568 = vadd.f32 %v1565, 1.0
    %v1569 = vadd.f32 %v1567, 1.0
    %v1570 = vrcp.pop %v1568
    %v1571 = vmul.f32 1.0, %v1570
    %v1572 = vrcp.pop %v1569
    %v1573 = vmul.f32 1.0, %v1572
    %1576 = vrot.lane.b32.xlu0 %v1554, 32
    %v1577 = vpop.permute.xlu0 %1576
    %1578 = vrot.lane.b32.xlu0 %v1559, 32
    %v1579 = vpop.permute.xlu0 %1578
    %v1582 = vmul.f32 %v1571, %v1577
    %v1583 = vmul.f32 %v1573, %v1579
    %1586 = vrot.lane.b32.xlu0 %v1582, 64
    %v1587 = vpop.permute.xlu0 %1586
    %1588 = vrot.lane.b32.xlu0 %v1583, 64
    %v1589 = vpop.permute.xlu0 %1588
    %v1592 = vadd.f32 %v1554, %v1587
    %v1593 = vadd.f32 %v1559, %v1589
    %v1594 = vtanh.pop %v1592
    %v1595 = vtanh.pop %v1593
    %v1596 = vsub.f32 1.0, %v1571
    %v1597 = vsub.f32 1.0, %v1573
    %1600 = vrot.lane.b32.xlu0 %v1594, 96
    %v1601 = vpop.permute.xlu0 %1600
    %1602 = vrot.lane.b32.xlu0 %v1595, 96
    %v1603 = vpop.permute.xlu0 %1602
    %v1606 = vmul.f32 %v1596, %v1601
    %v1607 = vmul.f32 %v1597, %v1603
    %v1608 = vmul.f32 %v1571, %v1474
    %v1609 = vmul.f32 %v1573, %v1476
    %v1610 = vadd.f32 %v1606, %v1608
    %v1611 = vadd.f32 %v1607, %v1609
    %v1612 = vmul.f32 %v1315, %v679
    %v1613 = vmul.f32 %v1316, %v680
    %1616 = vrot.lane.b32.xlu0 %v1610, 96
    %v1617 = vpop.permute.xlu0 %1616
    %1618 = vrot.lane.b32.xlu0 %v1611, 96
    %v1619 = vpop.permute.xlu0 %1618
    %v1622 = vmul.f32 %v677, %v1617
    %v1623 = vmul.f32 %v678, %v1619
    %v1624 = vadd.f32 %v1612, %v1622
    %v1625 = vadd.f32 %v1613, %v1623
    %v1627 = vsel %vm50, %v1624, 0
    %v1630 = vsel %vm50, %v1625, 0
    %1632 = vmatprep.subr.mxu0 0.0
    %1633 = vmatpush1.msra.mxu0 %v44
    %1634 = vmatprep.subr.mxu0 0.0
    %1635 = vmatpush1.msra.mxu0 %v45
    %1636 = vmatprep.subr.mxu0 0.0
    %1637 = vmatpush1.msra.mxu0 %v46
    %1638 = vmatprep.subr.mxu0 0.0
    %1639 = vmatpush1.msra.mxu0 %v47
    %1640 = vmatprep.subr.mxu0 0.0
    %1641 = vmatpush1.msra.mxu0 0.0
    %1642 = vmatprep.subr.mxu0 0.0
    %1643 = vmatpush1.msra.mxu0 0.0
    %1644 = vmatprep.subr.mxu0 0.0
    %1645 = vmatpush1.msra.mxu0 0.0
    %1646 = vmatprep.subr.mxu0 0.0
    %1647 = vmatpush1.msra.mxu0 0.0
    %1648 = vmatprep.subr.mxu0 0.0
    %1649 = vmatpush1.msra.mxu0 0.0
    %1650 = vmatprep.subr.mxu0 0.0
    %1651 = vmatpush1.msra.mxu0 0.0
    %1652 = vmatprep.subr.mxu0 0.0
    %1653 = vmatpush1.msra.mxu0 0.0
    %1654 = vmatprep.subr.mxu0 0.0
    %1655 = vmatpush1.msra.mxu0 0.0
    %1656 = vmatprep.subr.mxu0 0.0
    %1657 = vmatpush1.msra.mxu0 0.0
    %1658 = vmatprep.subr.mxu0 0.0
    %1659 = vmatpush1.msra.mxu0 0.0
    %1660 = vmatprep.subr.mxu0 0.0
    %1661 = vmatpush1.msra.mxu0 0.0
    %1662 = vmatprep.subr.mxu0 0.0
    %1663 = vmatpush1.msra.mxu0 0.0
    %1664 = vmatprep.subr.mxu0 0.0
    %1665 = vmatpush1.msra.mxu0 0.0
    %1666 = vmatprep.subr.mxu0 0.0
    %1667 = vmatpush1.msra.mxu0 0.0
    %1668 = vmatprep.subr.mxu0 0.0
    %1669 = vmatpush1.msra.mxu0 0.0
    %1670 = vmatprep.subr.mxu0 0.0
    %1671 = vmatpush1.msra.mxu0 0.0
    %1672 = vmatprep.subr.mxu0 0.0
    %1673 = vmatpush1.msra.mxu0 0.0
    %1674 = vmatprep.subr.mxu0 0.0
    %1675 = vmatpush1.msra.mxu0 0.0
    %1676 = vmatprep.subr.mxu0 0.0
    %1677 = vmatpush1.msra.mxu0 0.0
    %1678 = vmatprep.subr.mxu0 0.0
    %1679 = vmatpush1.msra.mxu0 0.0
    %1680 = vmatprep.subr.mxu0 0.0
    %1681 = vmatpush1.msra.mxu0 0.0
    %1682 = vmatprep.subr.mxu0 0.0
    %1683 = vmatpush1.msra.mxu0 0.0
    %1684 = vmatprep.subr.mxu0 0.0
    %1685 = vmatpush1.msra.mxu0 0.0
    %1686 = vmatprep.subr.mxu0 0.0
    %1687 = vmatpush1.msra.mxu0 0.0
    %1688 = vmatprep.subr.mxu0 0.0
    %1689 = vmatpush1.msra.mxu0 0.0
    %1690 = vmatprep.subr.mxu0 0.0
    %1691 = vmatpush1.msra.mxu0 0.0
    %1692 = vmatprep.subr.mxu0 0.0
    %1693 = vmatpush1.msra.mxu0 0.0
    %1694 = vmatprep.subr.mxu0 0.0
    %1695 = vmatpush1.msra.mxu0 0.0
    %1696 = vmatprep.mubr.f32.mxu0 0.0
    %1697 = vmatmul.mubr.f32.gmra.mrb[0].mxu0 %v1627
    %v1698 = vpop.f32.mrb[0].mxu0
    %v1699 = vadd.f32 %v48, %v1698
    %v1700 = vpop.f32.mrb[0].mxu0
    %1701 = vmatprep.mubr.f32.mxu0 0.0
    %1702 = vmatmul.mubr.f32.gmra.mrb[0].mxu0 %v1630
    %v1703 = vpop.f32.mrb[0].mxu0
    %v1704 = vadd.f32 %v49, %v1703
    %v1705 = vpop.f32.mrb[0].mxu0
    %1706 = vdwg.mxu0
    %1707 = vmatprep.subr.mxu0 0.0
    %1708 = vmatpush1.msra.mxu0 %v1699
    %1709 = vmatprep.subr.mxu0 0.0
    %1710 = vmatpush1.msra.mxu0 %v1704
    %1711 = vmatprep.subr.mxu0 0.0
    %1712 = vmatpush1.msra.mxu0 0.0
    %1713 = vmatprep.subr.mxu0 0.0
    %1714 = vmatpush1.msra.mxu0 0.0
    %1715 = vmatprep.subr.mxu0 0.0
    %1716 = vmatpush1.msra.mxu0 0.0
    %1717 = vmatprep.subr.mxu0 0.0
    %1718 = vmatpush1.msra.mxu0 0.0
    %1719 = vmatprep.subr.mxu0 0.0
    %1720 = vmatpush1.msra.mxu0 0.0
    %1721 = vmatprep.subr.mxu0 0.0
    %1722 = vmatpush1.msra.mxu0 0.0
    %1723 = vmatprep.subr.mxu0 0.0
    %1724 = vmatpush1.msra.mxu0 0.0
    %1725 = vmatprep.subr.mxu0 0.0
    %1726 = vmatpush1.msra.mxu0 0.0
    %1727 = vmatprep.subr.mxu0 0.0
    %1728 = vmatpush1.msra.mxu0 0.0
    %1729 = vmatprep.subr.mxu0 0.0
    %1730 = vmatpush1.msra.mxu0 0.0
    %1731 = vmatprep.subr.mxu0 0.0
    %1732 = vmatpush1.msra.mxu0 0.0
    %1733 = vmatprep.subr.mxu0 0.0
    %1734 = vmatpush1.msra.mxu0 0.0
    %1735 = vmatprep.subr.mxu0 0.0
    %1736 = vmatpush1.msra.mxu0 0.0
    %1737 = vmatprep.subr.mxu0 0.0
    %1738 = vmatpush1.msra.mxu0 0.0
    %1739 = vmatprep.subr.mxu0 0.0
    %1740 = vmatpush1.msra.mxu0 0.0
    %1741 = vmatprep.subr.mxu0 0.0
    %1742 = vmatpush1.msra.mxu0 0.0
    %1743 = vmatprep.subr.mxu0 0.0
    %1744 = vmatpush1.msra.mxu0 0.0
    %1745 = vmatprep.subr.mxu0 0.0
    %1746 = vmatpush1.msra.mxu0 0.0
    %1747 = vmatprep.subr.mxu0 0.0
    %1748 = vmatpush1.msra.mxu0 0.0
    %1749 = vmatprep.subr.mxu0 0.0
    %1750 = vmatpush1.msra.mxu0 0.0
    %1751 = vmatprep.subr.mxu0 0.0
    %1752 = vmatpush1.msra.mxu0 0.0
    %1753 = vmatprep.subr.mxu0 0.0
    %1754 = vmatpush1.msra.mxu0 0.0
    %1755 = vmatprep.subr.mxu0 0.0
    %1756 = vmatpush1.msra.mxu0 0.0
    %1757 = vmatprep.subr.mxu0 0.0
    %1758 = vmatpush1.msra.mxu0 0.0
    %1759 = vmatprep.subr.mxu0 0.0
    %1760 = vmatpush1.msra.mxu0 0.0
    %1761 = vmatprep.subr.mxu0 0.0
    %1762 = vmatpush1.msra.mxu0 0.0
    %1763 = vmatprep.subr.mxu0 0.0
    %1764 = vmatpush1.msra.mxu0 0.0
    %1765 = vmatprep.subr.mxu0 0.0
    %1766 = vmatpush1.msra.mxu0 0.0
    %1767 = vmatprep.subr.mxu0 0.0
    %1768 = vmatpush1.msra.mxu0 0.0
    %1769 = vmatprep.subr.mxu0 0.0
    %1770 = vmatpush1.msra.mxu0 0.0
    %1771 = vmatprep.mubr.f32.mxu0 0.0
    %1772 = vmatmul.mubr.f32.gmra.mrb[0].mxu0 %v134
    %v1773 = vpop.f32.mrb[0].mxu0
    %v1774 = vadd.f32 0.0, %v1773
    %v1775 = vpop.f32.mrb[0].mxu0
    %1776 = vmatprep.mubr.f32.mxu0 0.0
    %1777 = vmatmul.mubr.f32.gmra.mrb[0].mxu0 %v137
    %v1778 = vpop.f32.mrb[0].mxu0
    %v1779 = vadd.f32 0.0, %v1778
    %v1780 = vpop.f32.mrb[0].mxu0
    %1781 = vdwg.mxu0
    %1782 = vrot.lane.b32.xlu0 %v1624, 32
    %v1783 = vpop.permute.xlu0 %1782
    %1784 = vrot.lane.b32.xlu0 %v1625, 32
    %v1785 = vpop.permute.xlu0 %1784
    %v1788 = vsel %vm50, %v1774, %v1783
    %v1789 = vsel %vm50, %v1779, %v1785
    %v1791 = vsel %vm232, %v1788, 0
    %v1794 = vsel %vm232, %v1789, 0
    %1796 = vmatprep.subr.mxu0 0.0
    %1797 = vmatpush1.msra.mxu0 %v222
    %1798 = vmatprep.subr.mxu0 0.0
    %1799 = vmatpush1.msra.mxu0 %v223
    %1800 = vmatprep.subr.mxu0 0.0
    %1801 = vmatpush1.msra.mxu0 %v224
    %1802 = vmatprep.subr.mxu0 0.0
    %1803 = vmatpush1.msra.mxu0 %v225
    %1804 = vmatprep.subr.mxu0 0.0
    %1805 = vmatpush1.msra.mxu0 %v226
    %1806 = vmatprep.subr.mxu0 0.0
    %1807 = vmatpush1.msra.mxu0 %v227
    %1808 = vmatprep.subr.mxu0 0.0
    %1809 = vmatpush1.msra.mxu0 %v228
    %1810 = vmatprep.subr.mxu0 0.0
    %1811 = vmatpush1.msra.mxu0 %v229
    %1812 = vmatprep.subr.mxu0 0.0
    %1813 = vmatpush1.msra.mxu0 0.0
    %1814 = vmatprep.subr.mxu0 0.0
    %1815 = vmatpush1.msra.mxu0 0.0
    %1816 = vmatprep.subr.mxu0 0.0
    %1817 = vmatpush1.msra.mxu0 0.0
    %1818 = vmatprep.subr.mxu0 0.0
    %1819 = vmatpush1.msra.mxu0 0.0
    %1820 = vmatprep.subr.mxu0 0.0
    %1821 = vmatpush1.msra.mxu0 0.0
    %1822 = vmatprep.subr.mxu0 0.0
    %1823 = vmatpush1.msra.mxu0 0.0
    %1824 = vmatprep.subr.mxu0 0.0
    %1825 = vmatpush1.msra.mxu0 0.0
    %1826 = vmatprep.subr.mxu0 0.0
    %1827 = vmatpush1.msra.mxu0 0.0
    %1828 = vmatprep.subr.mxu0 0.0
    %1829 = vmatpush1.msra.mxu0 0.0
    %1830 = vmatprep.subr.mxu0 0.0
    %1831 = vmatpush1.msra.mxu0 0.0
    %1832 = vmatprep.subr.mxu0 0.0
    %1833 = vmatpush1.msra.mxu0 0.0
    %1834 = vmatprep.subr.mxu0 0.0
    %1835 = vmatpush1.msra.mxu0 0.0
    %1836 = vmatprep.subr.mxu0 0.0
    %1837 = vmatpush1.msra.mxu0 0.0
    %1838 = vmatprep.subr.mxu0 0.0
    %1839 = vmatpush1.msra.mxu0 0.0
    %1840 = vmatprep.subr.mxu0 0.0
    %1841 = vmatpush1.msra.mxu0 0.0
    %1842 = vmatprep.subr.mxu0 0.0
    %1843 = vmatpush1.msra.mxu0 0.0
    %1844 = vmatprep.subr.mxu0 0.0
    %1845 = vmatpush1.msra.mxu0 0.0
    %1846 = vmatprep.subr.mxu0 0.0
    %1847 = vmatpush1.msra.mxu0 0.0
    %1848 = vmatprep.subr.mxu0 0.0
    %1849 = vmatpush1.msra.mxu0 0.0
    %1850 = vmatprep.subr.mxu0 0.0
    %1851 = vmatpush1.msra.mxu0 0.0
    %1852 = vmatprep.subr.mxu0 0.0
    %1853 = vmatpush1.msra.mxu0 0.0
    %1854 = vmatprep.subr.mxu0 0.0
    %1855 = vmatpush1.msra.mxu0 0.0
    %1856 = vmatprep.subr.mxu0 0.0
    %1857 = vmatpush1.msra.mxu0 0.0
    %1858 = vmatprep.subr.mxu0 0.0
    %1859 = vmatpush1.msra.mxu0 0.0
    %1860 = vmatprep.mubr.f32.mxu0 0.0
    %1861 = vmatmul.mubr.f32.gmra.mrb[0].mxu0 %v1791
    %v1862 = vpop.f32.mrb[0].mxu0
    %v1863 = vadd.f32 %v230, %v1862
    %v1864 = vpop.f32.mrb[0].mxu0
    %1865 = vmatprep.mubr.f32.mxu0 0.0
    %1866 = vmatmul.mubr.f32.gmra.mrb[0].mxu0 %v1794
    %v1867 = vpop.f32.mrb[0].mxu0
    %v1868 = vadd.f32 %v231, %v1867
    %v1869 = vpop.f32.mrb[0].mxu0
    %1870 = vdwg.mxu0
    %v1871 = vxor.u32 %v1863, 2147483648
    %v1872 = vxor.u32 %v1868, 2147483648
    %v1873 = vmul.f32 %v1871, 1.442695
    %v1874 = vpow.pop %v1873
    %v1875 = vmul.f32 %v1872, 1.442695
    %v1876 = vpow.pop %v1875
    %v1877 = vadd.f32 %v1874, 1.0
    %v1878 = vadd.f32 %v1876, 1.0
    %v1879 = vrcp.pop %v1877
    %v1880 = vmul.f32 1.0, %v1879
    %v1881 = vrcp.pop %v1878
    %v1882 = vmul.f32 1.0, %v1881
    %1885 = vrot.lane.b32.xlu0 %v1863, 32
    %v1886 = vpop.permute.xlu0 %1885
    %1887 = vrot.lane.b32.xlu0 %v1868, 32
    %v1888 = vpop.permute.xlu0 %1887
    %v1891 = vmul.f32 %v1880, %v1886
    %v1892 = vmul.f32 %v1882, %v1888
    %1895 = vrot.lane.b32.xlu0 %v1891, 64
    %v1896 = vpop.permute.xlu0 %1895
    %1897 = vrot.lane.b32.xlu0 %v1892, 64
    %v1898 = vpop.permute.xlu0 %1897
    %v1901 = vadd.f32 %v1863, %v1896
    %v1902 = vadd.f32 %v1868, %v1898
    %v1903 = vtanh.pop %v1901
    %v1904 = vtanh.pop %v1902
    %v1905 = vsub.f32 1.0, %v1880
    %v1906 = vsub.f32 1.0, %v1882
    %1909 = vrot.lane.b32.xlu0 %v1903, 96
    %v1910 = vpop.permute.xlu0 %1909
    %1911 = vrot.lane.b32.xlu0 %v1904, 96
    %v1912 = vpop.permute.xlu0 %1911
    %v1915 = vmul.f32 %v1905, %v1910
    %v1916 = vmul.f32 %v1906, %v1912
    %v1917 = vmul.f32 %v1880, %v1783
    %v1918 = vmul.f32 %v1882, %v1785
    %v1919 = vadd.f32 %v1915, %v1917
    %v1920 = vadd.f32 %v1916, %v1918
    %v1921 = vmul.f32 %v1624, %v992
    %v1922 = vmul.f32 %v1625, %v993
    %1925 = vrot.lane.b32.xlu0 %v1919, 96
    %v1926 = vpop.permute.xlu0 %1925
    %1927 = vrot.lane.b32.xlu0 %v1920, 96
    %v1928 = vpop.permute.xlu0 %1927
    %v1931 = vmul.f32 %v990, %v1926
    %v1932 = vmul.f32 %v991, %v1928
    %v1933 = vadd.f32 %v1921, %v1931
    %v1934 = vadd.f32 %v1922, %v1932
    %1939 = vrot.lane.b32.xlu0 %v44, 96
    %v1940 = vpop.permute.xlu0 %1939
    %1941 = vrot.lane.b32.xlu0 %v45, 96
    %v1942 = vpop.permute.xlu0 %1941
    %1943 = vrot.lane.b32.xlu0 %v46, 96
    %v1944 = vpop.permute.xlu0 %1943
    %1945 = vrot.lane.b32.xlu0 %v47, 96
    %v1946 = vpop.permute.xlu0 %1945
    %1953 = vrot.lane.b32.xlu0 %v48, 96
    %v1954 = vpop.permute.xlu0 %1953
    %1955 = vrot.lane.b32.xlu0 %v49, 96
    %v1956 = vpop.permute.xlu0 %1955
    %v1960 = vsel %vm50, %v1933, 0
    %v1963 = vsel %vm50, %v1934, 0
    %1965 = vmatprep.subr.mxu0 0.0
    %1966 = vmatpush1.msra.mxu0 %v1940
    %1967 = vmatprep.subr.mxu0 0.0
    %1968 = vmatpush1.msra.mxu0 %v1942
    %1969 = vmatprep.subr.mxu0 0.0
    %1970 = vmatpush1.msra.mxu0 %v1944
    %1971 = vmatprep.subr.mxu0 0.0
    %1972 = vmatpush1.msra.mxu0 %v1946
    %1973 = vmatprep.subr.mxu0 0.0
    %1974 = vmatpush1.msra.mxu0 0.0
    %1975 = vmatprep.subr.mxu0 0.0
    %1976 = vmatpush1.msra.mxu0 0.0
    %1977 = vmatprep.subr.mxu0 0.0
    %1978 = vmatpush1.msra.mxu0 0.0
    %1979 = vmatprep.subr.mxu0 0.0
    %1980 = vmatpush1.msra.mxu0 0.0
    %1981 = vmatprep.subr.mxu0 0.0
    %1982 = vmatpush1.msra.mxu0 0.0
    %1983 = vmatprep.subr.mxu0 0.0
    %1984 = vmatpush1.msra.mxu0 0.0
    %1985 = vmatprep.subr.mxu0 0.0
    %1986 = vmatpush1.msra.mxu0 0.0
    %1987 = vmatprep.subr.mxu0 0.0
    %1988 = vmatpush1.msra.mxu0 0.0
    %1989 = vmatprep.subr.mxu0 0.0
    %1990 = vmatpush1.msra.mxu0 0.0
    %1991 = vmatprep.subr.mxu0 0.0
    %1992 = vmatpush1.msra.mxu0 0.0
    %1993 = vmatprep.subr.mxu0 0.0
    %1994 = vmatpush1.msra.mxu0 0.0
    %1995 = vmatprep.subr.mxu0 0.0
    %1996 = vmatpush1.msra.mxu0 0.0
    %1997 = vmatprep.subr.mxu0 0.0
    %1998 = vmatpush1.msra.mxu0 0.0
    %1999 = vmatprep.subr.mxu0 0.0
    %2000 = vmatpush1.msra.mxu0 0.0
    %2001 = vmatprep.subr.mxu0 0.0
    %2002 = vmatpush1.msra.mxu0 0.0
    %2003 = vmatprep.subr.mxu0 0.0
    %2004 = vmatpush1.msra.mxu0 0.0
    %2005 = vmatprep.subr.mxu0 0.0
    %2006 = vmatpush1.msra.mxu0 0.0
    %2007 = vmatprep.subr.mxu0 0.0
    %2008 = vmatpush1.msra.mxu0 0.0
    %2009 = vmatprep.subr.mxu0 0.0
    %2010 = vmatpush1.msra.mxu0 0.0
    %2011 = vmatprep.subr.mxu0 0.0
    %2012 = vmatpush1.msra.mxu0 0.0
    %2013 = vmatprep.subr.mxu0 0.0
    %2014 = vmatpush1.msra.mxu0 0.0
    %2015 = vmatprep.subr.mxu0 0.0
    %2016 = vmatpush1.msra.mxu0 0.0
    %2017 = vmatprep.subr.mxu0 0.0
    %2018 = vmatpush1.msra.mxu0 0.0
    %2019 = vmatprep.subr.mxu0 0.0
    %2020 = vmatpush1.msra.mxu0 0.0
    %2021 = vmatprep.subr.mxu0 0.0
    %2022 = vmatpush1.msra.mxu0 0.0
    %2023 = vmatprep.subr.mxu0 0.0
    %2024 = vmatpush1.msra.mxu0 0.0
    %2025 = vmatprep.subr.mxu0 0.0
    %2026 = vmatpush1.msra.mxu0 0.0
    %2027 = vmatprep.subr.mxu0 0.0
    %2028 = vmatpush1.msra.mxu0 0.0
    %2029 = vmatprep.mubr.f32.mxu0 0.0
    %2030 = vmatmul.mubr.f32.gmra.mrb[0].mxu0 %v1960
    %v2031 = vpop.f32.mrb[0].mxu0
    %v2032 = vadd.f32 %v1954, %v2031
    %v2033 = vpop.f32.mrb[0].mxu0
    %2034 = vmatprep.mubr.f32.mxu0 0.0
    %2035 = vmatmul.mubr.f32.gmra.mrb[0].mxu0 %v1963
    %v2036 = vpop.f32.mrb[0].mxu0
    %v2037 = vadd.f32 %v1956, %v2036
    %v2038 = vpop.f32.mrb[0].mxu0
    %2039 = vdwg.mxu0
    %v2040 = vmax.f32 %v2032, 0.0
    %v2041 = vmax.f32 %v2037, 0.0
    %2042 = vrot.lane.b32.xlu0 %v44, 64
    %v2043 = vpop.permute.xlu0 %2042
    %2044 = vrot.lane.b32.xlu0 %v45, 64
    %v2045 = vpop.permute.xlu0 %2044
    %2046 = vrot.lane.b32.xlu0 %v46, 64
    %v2047 = vpop.permute.xlu0 %2046
    %2048 = vrot.lane.b32.xlu0 %v47, 64
    %v2049 = vpop.permute.xlu0 %2048
    %2054 = vrot.lane.b32.xlu0 %v48, 64
    %v2055 = vpop.permute.xlu0 %2054
    %2056 = vrot.lane.b32.xlu0 %v49, 64
    %v2057 = vpop.permute.xlu0 %2056
    %v2061 = vsel %vm50, %v2040, 0
    %v2064 = vsel %vm50, %v2041, 0
    %2066 = vmatprep.subr.mxu0 0.0
    %2067 = vmatpush1.msra.mxu0 %v2043
    %2068 = vmatprep.subr.mxu0 0.0
    %2069 = vmatpush1.msra.mxu0 %v2045
    %2070 = vmatprep.subr.mxu0 0.0
    %2071 = vmatpush1.msra.mxu0 %v2047
    %2072 = vmatprep.subr.mxu0 0.0
    %2073 = vmatpush1.msra.mxu0 %v2049
    %2074 = vmatprep.subr.mxu0 0.0
    %2075 = vmatpush1.msra.mxu0 0.0
    %2076 = vmatprep.subr.mxu0 0.0
    %2077 = vmatpush1.msra.mxu0 0.0
    %2078 = vmatprep.subr.mxu0 0.0
    %2079 = vmatpush1.msra.mxu0 0.0
    %2080 = vmatprep.subr.mxu0 0.0
    %2081 = vmatpush1.msra.mxu0 0.0
    %2082 = vmatprep.subr.mxu0 0.0
    %2083 = vmatpush1.msra.mxu0 0.0
    %2084 = vmatprep.subr.mxu0 0.0
    %2085 = vmatpush1.msra.mxu0 0.0
    %2086 = vmatprep.subr.mxu0 0.0
    %2087 = vmatpush1.msra.mxu0 0.0
    %2088 = vmatprep.subr.mxu0 0.0
    %2089 = vmatpush1.msra.mxu0 0.0
    %2090 = vmatprep.subr.mxu0 0.0
    %2091 = vmatpush1.msra.mxu0 0.0
    %2092 = vmatprep.subr.mxu0 0.0
    %2093 = vmatpush1.msra.mxu0 0.0
    %2094 = vmatprep.subr.mxu0 0.0
    %2095 = vmatpush1.msra.mxu0 0.0
    %2096 = vmatprep.subr.mxu0 0.0
    %2097 = vmatpush1.msra.mxu0 0.0
    %2098 = vmatprep.subr.mxu0 0.0
    %2099 = vmatpush1.msra.mxu0 0.0
    %2100 = vmatprep.subr.mxu0 0.0
    %2101 = vmatpush1.msra.mxu0 0.0
    %2102 = vmatprep.subr.mxu0 0.0
    %2103 = vmatpush1.msra.mxu0 0.0
    %2104 = vmatprep.subr.mxu0 0.0
    %2105 = vmatpush1.msra.mxu0 0.0
    %2106 = vmatprep.subr.mxu0 0.0
    %2107 = vmatpush1.msra.mxu0 0.0
    %2108 = vmatprep.subr.mxu0 0.0
    %2109 = vmatpush1.msra.mxu0 0.0
    %2110 = vmatprep.subr.mxu0 0.0
    %2111 = vmatpush1.msra.mxu0 0.0
    %2112 = vmatprep.subr.mxu0 0.0
    %2113 = vmatpush1.msra.mxu0 0.0
    %2114 = vmatprep.subr.mxu0 0.0
    %2115 = vmatpush1.msra.mxu0 0.0
    %2116 = vmatprep.subr.mxu0 0.0
    %2117 = vmatpush1.msra.mxu0 0.0
    %2118 = vmatprep.subr.mxu0 0.0
    %2119 = vmatpush1.msra.mxu0 0.0
    %2120 = vmatprep.subr.mxu0 0.0
    %2121 = vmatpush1.msra.mxu0 0.0
    %2122 = vmatprep.subr.mxu0 0.0
    %2123 = vmatpush1.msra.mxu0 0.0
    %2124 = vmatprep.subr.mxu0 0.0
    %2125 = vmatpush1.msra.mxu0 0.0
    %2126 = vmatprep.subr.mxu0 0.0
    %2127 = vmatpush1.msra.mxu0 0.0
    %2128 = vmatprep.subr.mxu0 0.0
    %2129 = vmatpush1.msra.mxu0 0.0
    %2130 = vmatprep.mubr.f32.mxu0 0.0
    %2131 = vmatmul.mubr.f32.gmra.mrb[0].mxu0 %v2061
    %v2132 = vpop.f32.mrb[0].mxu0
    %v2133 = vadd.f32 %v2055, %v2132
    %v2134 = vpop.f32.mrb[0].mxu0
    %2135 = vmatprep.mubr.f32.mxu0 0.0
    %2136 = vmatmul.mubr.f32.gmra.mrb[0].mxu0 %v2064
    %v2137 = vpop.f32.mrb[0].mxu0
    %v2138 = vadd.f32 %v2057, %v2137
    %v2139 = vpop.f32.mrb[0].mxu0
    %2140 = vdwg.mxu0
    %v2141 = vmax.f32 %v2133, 0.0
    %v2142 = vmax.f32 %v2138, 0.0
    %2143 = vrot.lane.b32.xlu0 %v44, 32
    %v2144 = vpop.permute.xlu0 %2143
    %2145 = vrot.lane.b32.xlu0 %v45, 32
    %v2146 = vpop.permute.xlu0 %2145
    %2147 = vrot.lane.b32.xlu0 %v46, 32
    %v2148 = vpop.permute.xlu0 %2147
    %2149 = vrot.lane.b32.xlu0 %v47, 32
    %v2150 = vpop.permute.xlu0 %2149
    %2155 = vrot.lane.b32.xlu0 %v48, 32
    %v2156 = vpop.permute.xlu0 %2155
    %2157 = vrot.lane.b32.xlu0 %v49, 32
    %v2158 = vpop.permute.xlu0 %2157
    %v2162 = vsel %vm50, %v2141, 0
    %v2165 = vsel %vm50, %v2142, 0
    %2167 = vmatprep.subr.mxu0 0.0
    %2168 = vmatpush1.msra.mxu0 %v2144
    %2169 = vmatprep.subr.mxu0 0.0
    %2170 = vmatpush1.msra.mxu0 %v2146
    %2171 = vmatprep.subr.mxu0 0.0
    %2172 = vmatpush1.msra.mxu0 %v2148
    %2173 = vmatprep.subr.mxu0 0.0
    %2174 = vmatpush1.msra.mxu0 %v2150
    %2175 = vmatprep.subr.mxu0 0.0
    %2176 = vmatpush1.msra.mxu0 0.0
    %2177 = vmatprep.subr.mxu0 0.0
    %2178 = vmatpush1.msra.mxu0 0.0
    %2179 = vmatprep.subr.mxu0 0.0
    %2180 = vmatpush1.msra.mxu0 0.0
    %2181 = vmatprep.subr.mxu0 0.0
    %2182 = vmatpush1.msra.mxu0 0.0
    %2183 = vmatprep.subr.mxu0 0.0
    %2184 = vmatpush1.msra.mxu0 0.0
    %2185 = vmatprep.subr.mxu0 0.0
    %2186 = vmatpush1.msra.mxu0 0.0
    %2187 = vmatprep.subr.mxu0 0.0
    %2188 = vmatpush1.msra.mxu0 0.0
    %2189 = vmatprep.subr.mxu0 0.0
    %2190 = vmatpush1.msra.mxu0 0.0
    %2191 = vmatprep.subr.mxu0 0.0
    %2192 = vmatpush1.msra.mxu0 0.0
    %2193 = vmatprep.subr.mxu0 0.0
    %2194 = vmatpush1.msra.mxu0 0.0
    %2195 = vmatprep.subr.mxu0 0.0
    %2196 = vmatpush1.msra.mxu0 0.0
    %2197 = vmatprep.subr.mxu0 0.0
    %2198 = vmatpush1.msra.mxu0 0.0
    %2199 = vmatprep.subr.mxu0 0.0
    %2200 = vmatpush1.msra.mxu0 0.0
    %2201 = vmatprep.subr.mxu0 0.0
    %2202 = vmatpush1.msra.mxu0 0.0
    %2203 = vmatprep.subr.mxu0 0.0
    %2204 = vmatpush1.msra.mxu0 0.0
    %2205 = vmatprep.subr.mxu0 0.0
    %2206 = vmatpush1.msra.mxu0 0.0
    %2207 = vmatprep.subr.mxu0 0.0
    %2208 = vmatpush1.msra.mxu0 0.0
    %2209 = vmatprep.subr.mxu0 0.0
    %2210 = vmatpush1.msra.mxu0 0.0
    %2211 = vmatprep.subr.mxu0 0.0
    %2212 = vmatpush1.msra.mxu0 0.0
    %2213 = vmatprep.subr.mxu0 0.0
    %2214 = vmatpush1.msra.mxu0 0.0
    %2215 = vmatprep.subr.mxu0 0.0
    %2216 = vmatpush1.msra.mxu0 0.0
    %2217 = vmatprep.subr.mxu0 0.0
    %2218 = vmatpush1.msra.mxu0 0.0
    %2219 = vmatprep.subr.mxu0 0.0
    %2220 = vmatpush1.msra.mxu0 0.0
    %2221 = vmatprep.subr.mxu0 0.0
    %2222 = vmatpush1.msra.mxu0 0.0
    %2223 = vmatprep.subr.mxu0 0.0
    %2224 = vmatpush1.msra.mxu0 0.0
    %2225 = vmatprep.subr.mxu0 0.0
    %2226 = vmatpush1.msra.mxu0 0.0
    %2227 = vmatprep.subr.mxu0 0.0
    %2228 = vmatpush1.msra.mxu0 0.0
    %2229 = vmatprep.subr.mxu0 0.0
    %2230 = vmatpush1.msra.mxu0 0.0
    %2231 = vmatprep.mubr.f32.mxu0 0.0
    %2232 = vmatmul.mubr.f32.gmra.mrb[0].mxu0 %v2162
    %v2233 = vpop.f32.mrb[0].mxu0
    %v2234 = vadd.f32 %v2156, %v2233
    %v2235 = vpop.f32.mrb[0].mxu0
    %2236 = vmatprep.mubr.f32.mxu0 0.0
    %2237 = vmatmul.mubr.f32.gmra.mrb[0].mxu0 %v2165
    %v2238 = vpop.f32.mrb[0].mxu0
    %v2239 = vadd.f32 %v2158, %v2238
    %v2240 = vpop.f32.mrb[0].mxu0
    %2241 = vdwg.mxu0
    %2244 = vrot.lane.b32.xlu0 %v2234, 32
    %v2245 = vpop.permute.xlu0 %2244
    %2246 = vrot.lane.b32.xlu0 %v2239, 32
    %v2247 = vpop.permute.xlu0 %2246
    %v2250 = vsel %vm50, %v1933, %v2245
    %v2251 = vsel %vm50, %v1934, %v2247
    %v2252 = vsel %vm232, %v2250, 0.0
    %v2253 = vsel %vm232, %v2251, 0.0
    %2254 = vst [vmem:[#allocation7] sm:$0xff] %v2252
    %2255 = vst [vmem:[#allocation7 + $0x8] sm:$0xff] %v2253
    // Predicated region
    $region18: #{tpu_custom_call.1} parent=1 // pred_check
      _
    $region19: #{tpu_custom_call.1} parent=1 // pred_check_branch
      %2257 = sbr.rel (0) target = $region21
    $region20: #{tpu_custom_call.1} parent=1 // pred_region
      %s2259 = ssub.s32 256, 256
      %2260 = vsyncadd [#allocation4], %s2259
      %s2261 = sshll.u32 [#allocation7], 4
      %s2262 = int_to_ptr.vmem [resolvable:$true] %s2261
      %2267 = dma.vmem_to_hbm [thread:$0]  %s2262, 256, %s2, [#allocation4], 128, 128, 8
    $region21: #{tpu_custom_call.1} parent=1 // pred_fallthru
      _
    // Predicated region
    $region22: #{tpu_custom_call.1} parent=1 // pred_check
      _
    $region23: #{tpu_custom_call.1} parent=1 // pred_check_branch
      %2269 = sbr.rel (0) target = $region25
    $region24: #{tpu_custom_call.1} parent=1 // pred_region
      %2270 = dma.done [#allocation4], 256
    $region25: #{tpu_custom_call.1} parent=1 // pred_fallthru
      _
    %2271 = vsyncpa [#allocation3], 1
    %2272 = vsyncpa [#allocation6], 1
    %2273 = vsyncpa [#allocation4], 1

</llo_original>
